<compile_context>
chip_gen: v5e
topology: v5e:2x2
jax: 0.10.0
libtpu: 0.0.40
codegen_flags: <defaults>
</compile_context>

<pallas_src>
import functools

import jax
import jax.numpy as jnp
from jax.experimental import pallas as pl
from jax.experimental.pallas import tpu as pltpu

HIDDEN_C = 8      # conv output channels of the synthetic base model
FEAT_DIM = 10     # base-model output features / fc_combine width
NUM_SLICES = 3    # loop range in StackTailored.forward
ROW_BLK = 8       # (slice, batch) instances per grid step (multiple of 8 sublanes)


def _round_up(v, m):
    return (v + m - 1) // m * m


def _stack_tailored_kernel(x_ref, mask_ref, conv_w_ref, conv_b_ref,
                           w_comb_ref, b_comb_ref, out_ref, *,
                           pad_l, npad, offsets):
    """Fused conv3x3 + ReLU + global-avg-pool + (head∘fc_combine) for a row block.

    x_ref     : [ROW_BLK, L]   flattened zero-padded images (lane-dense pixels)
    mask_ref  : [1, npad]      1/(H*W) at valid interior pixels, 0 elsewhere
    conv_w_ref: [8, 9]  (SMEM) conv weights, tap index t = ky*3 + kx
    conv_b_ref: [8]     (SMEM) conv bias
    w_comb_ref: [8, 10]        head_w.T @ fc_w.T   (folded linears)
    b_comb_ref: [1, 10]        head_b @ fc_w.T + fc_b
    out_ref   : [ROW_BLK, 10]
    """
    xx = x_ref[...]                                    # [ROW_BLK, L]
    mask = mask_ref[...]                               # [1, npad]

    # 9 shifted lane-views of the flattened padded image, shared by all channels.
    taps = [xx[:, pad_l + off: pad_l + off + npad] for off in offsets]

    cols = []
    for c in range(HIDDEN_C):                          # VPU broadcast-scalar conv
        acc = taps[0] * conv_w_ref[c, 0]
        for t in range(1, 9):
            acc = acc + taps[t] * conv_w_ref[c, t]
        acc = jnp.maximum(acc + conv_b_ref[c], 0.0)    # bias + ReLU
        # masked mean over pixels == global average pool of the valid outputs
        cols.append(jnp.sum(acc * mask, axis=1, keepdims=True))   # [ROW_BLK, 1]
    pooled = jnp.concatenate(cols, axis=1)             # [ROW_BLK, 8]

    out_ref[...] = (jnp.dot(pooled, w_comb_ref[...],
                            preferred_element_type=jnp.float32)
                    + b_comb_ref[...])                 # [ROW_BLK, 10]


def init_params(key):
    """Deterministic parameter init (synthetic; shapes follow the module definition)."""
    k = jax.random.split(key, 6)
    scale = 0.1
    conv_w = scale * jax.random.normal(k[0], (HIDDEN_C, 1, 3, 3), jnp.float32)  # Conv2d(1,8,3)
    conv_b = scale * jax.random.normal(k[1], (HIDDEN_C,), jnp.float32)
    head_w = scale * jax.random.normal(k[2], (FEAT_DIM, HIDDEN_C), jnp.float32)  # Linear(8,10)
    head_b = scale * jax.random.normal(k[3], (FEAT_DIM,), jnp.float32)
    fc_w = scale * jax.random.normal(k[4], (FEAT_DIM, FEAT_DIM), jnp.float32)    # Linear(10,10)
    fc_b = scale * jax.random.normal(k[5], (FEAT_DIM,), jnp.float32)
    return dict(conv_w=conv_w, conv_b=conv_b, head_w=head_w, head_b=head_b,
                fc_w=fc_w, fc_b=fc_b)


def stack_tailored_forward(x, params):
    """x: [B, 3, H, W] (NCHW, like PyTorch) -> [B, 3, 10]."""
    B, Cin, H, W = x.shape
    assert Cin == NUM_SLICES
    Hp, Wp = H + 2, W + 2
    npad = Hp * Wp                       # flattened padded-image length
    halo = Wp + 1                        # max |tap offset| for a 3x3 kernel
    L = _round_up(npad + 2 * halo, 128)  # lane-aligned row width
    pad_l = halo
    pad_r = L - npad - pad_l

    rows = B * NUM_SLICES                # one row per (batch, slice) instance
    rows_pad = _round_up(rows, ROW_BLK)

    # ---- input prep: spatial zero-pad + flatten only (no 9x im2col blowup) ----
    xp = jnp.pad(x.astype(jnp.float32), ((0, 0), (0, 0), (1, 1), (1, 1)))
    flat = xp.reshape(rows, npad)                                     # batch-major rows
    flat = jnp.pad(flat, ((0, rows_pad - rows), (pad_l, pad_r)))      # [rows_pad, L]

    # Pool mask: 1/(H*W) at interior (valid conv output) positions of the padded grid.
    mask = jnp.pad(jnp.full((H, W), 1.0 / (H * W), jnp.float32),
                   ((1, 1), (1, 1))).reshape(1, npad)

    # ---- fold head Linear(8,10) with fc_combine Linear(10,10): exact ----
    w_comb = (params["head_w"].T @ params["fc_w"].T).astype(jnp.float32)          # [8, 10]
    b_comb = (params["head_b"] @ params["fc_w"].T
              + params["fc_b"]).reshape(1, FEAT_DIM).astype(jnp.float32)          # [1, 10]

    conv_w = params["conv_w"].reshape(HIDDEN_C, 9).astype(jnp.float32)            # [8, 9]
    conv_b = params["conv_b"].astype(jnp.float32)                                 # [8]

    # flat-index offsets of the 9 taps relative to an interior pixel
    offsets = tuple((dy - 1) * Wp + (dx - 1) for dy in range(3) for dx in range(3))

    kernel = functools.partial(_stack_tailored_kernel,
                               pad_l=pad_l, npad=npad, offsets=offsets)

    vmem = pl.BlockSpec(memory_space=pltpu.MemorySpace.VMEM)
    smem = pl.BlockSpec(memory_space=pltpu.MemorySpace.SMEM)

    out = pl.pallas_call(
        kernel,
        out_shape=jax.ShapeDtypeStruct((rows_pad, FEAT_DIM), jnp.float32),
        grid=(rows_pad // ROW_BLK,),
        in_specs=[pl.BlockSpec((ROW_BLK, L), lambda r: (r, 0)),   # image rows (tiled)
                  vmem,    # mask
                  smem,    # conv_w (scalars)
                  smem,    # conv_b (scalars)
                  vmem,    # w_comb
                  vmem],   # b_comb
        out_specs=pl.BlockSpec((ROW_BLK, FEAT_DIM), lambda r: (r, 0)),
        compiler_params=pltpu.CompilerParams(
            dimension_semantics=("parallel",)),
    )(flat, mask, conv_w, conv_b, w_comb, b_comb)

    return out[:rows].reshape(B, NUM_SLICES, FEAT_DIM)               # [B, 3, 10]


# ---------------------------- pure-JAX reference ----------------------------
def _im2col_3x3_pad1(x_slice):
    B, H, W = x_slice.shape
    xp = jnp.pad(x_slice, ((0, 0), (1, 1), (1, 1)))
    cols = [xp[:, dy:dy + H, dx:dx + W] for dy in range(3) for dx in range(3)]
    return jnp.stack(cols, axis=-1).reshape(B * H * W, 9)


def stack_tailored_reference(x, params):
    B, _, H, W = x.shape
    HW = H * W
    conv_w_m = params["conv_w"].reshape(HIDDEN_C, 9).T
    outs = []
    for i in range(NUM_SLICES):
        p = _im2col_3x3_pad1(x[:, i, :, :])
        h = jnp.maximum(p @ conv_w_m + params["conv_b"][None, :], 0.0)
        pooled = h.reshape(B, HW, HIDDEN_C).mean(axis=1)
        feat = pooled @ params["head_w"].T + params["head_b"][None, :]
        outs.append(feat)
    xout = jnp.stack(outs, axis=1)                                   # [B, 3, 10]
    return xout @ params["fc_w"].T + params["fc_b"][None, None, :]


if __name__ == "__main__":
    key = jax.random.PRNGKey(0)
    k_x, k_p = jax.random.split(key)
    B, H, W = 4, 16, 16
    x = jax.random.normal(k_x, (B, NUM_SLICES, H, W), jnp.float32)   # NCHW input
    params = init_params(k_p)

    out = jax.jit(stack_tailored_forward)(x, params)
    out = jax.block_until_ready(out)

    ref = stack_tailored_reference(x, params)
    assert out.shape == (B, NUM_SLICES, FEAT_DIM)
    assert jnp.allclose(out, ref, atol=1e-3, rtol=1e-3)

    print("KERNEL_OK")
</pallas_src>

<mosaic_0001>
module attributes {stable_mosaic.version = 11 : i64} {
  func.func @_stack_tailored_kernel(%arg0: i32, %arg1: memref<8x384xf32, #tpu.memory_space<vmem>>, %arg2: memref<1x324xf32, #tpu.memory_space<vmem>>, %arg3: memref<8x9xf32, #tpu.memory_space<smem>>, %arg4: memref<8xf32, #tpu.memory_space<smem>>, %arg5: memref<8x10xf32, #tpu.memory_space<vmem>>, %arg6: memref<1x10xf32, #tpu.memory_space<vmem>>, %arg7: memref<8x10xf32, #tpu.memory_space<vmem>>) attributes {dimension_semantics = [#tpu.dimension_semantics<parallel>], iteration_bounds = array<i64: 2>, scalar_prefetch = 0 : i64, scratch_operands = 0 : i64, tpu.core_type = #tpu.core_type<tc>, window_params = [{transform_indices = @transform_0, window_bounds = array<i64: 8, 384>}, {pipeline_mode = #tpu.pipeline_mode<synchronous>, transform_indices = @transform_1, window_bounds = array<i64: 1, 324>}, {transform_indices = @transform_2, window_bounds = array<i64: 8, 9>}, {transform_indices = @transform_3, window_bounds = array<i64: 8>}, {pipeline_mode = #tpu.pipeline_mode<synchronous>, transform_indices = @transform_4, window_bounds = array<i64: 8, 10>}, {pipeline_mode = #tpu.pipeline_mode<synchronous>, transform_indices = @transform_5, window_bounds = array<i64: 1, 10>}, {transform_indices = @transform_6, window_bounds = array<i64: 8, 10>}]} {
    %c0 = arith.constant 0 : index
    %c0_0 = arith.constant 0 : index
    %0 = vector.load %arg1[%c0, %c0_0] : memref<8x384xf32, #tpu.memory_space<vmem>>, vector<8x384xf32>
    %c0_1 = arith.constant 0 : index
    %c0_2 = arith.constant 0 : index
    %1 = vector.load %arg2[%c0_1, %c0_2] : memref<1x324xf32, #tpu.memory_space<vmem>>, vector<1x324xf32>
    %2 = vector.extract_strided_slice %0 {offsets = [0, 0], sizes = [8, 324], strides = [1, 1]} : vector<8x384xf32> to vector<8x324xf32>
    %3 = vector.extract_strided_slice %0 {offsets = [0, 1], sizes = [8, 324], strides = [1, 1]} : vector<8x384xf32> to vector<8x324xf32>
    %4 = vector.extract_strided_slice %0 {offsets = [0, 2], sizes = [8, 324], strides = [1, 1]} : vector<8x384xf32> to vector<8x324xf32>
    %5 = vector.extract_strided_slice %0 {offsets = [0, 18], sizes = [8, 324], strides = [1, 1]} : vector<8x384xf32> to vector<8x324xf32>
    %6 = vector.extract_strided_slice %0 {offsets = [0, 19], sizes = [8, 324], strides = [1, 1]} : vector<8x384xf32> to vector<8x324xf32>
    %7 = vector.extract_strided_slice %0 {offsets = [0, 20], sizes = [8, 324], strides = [1, 1]} : vector<8x384xf32> to vector<8x324xf32>
    %8 = vector.extract_strided_slice %0 {offsets = [0, 36], sizes = [8, 324], strides = [1, 1]} : vector<8x384xf32> to vector<8x324xf32>
    %9 = vector.extract_strided_slice %0 {offsets = [0, 37], sizes = [8, 324], strides = [1, 1]} : vector<8x384xf32> to vector<8x324xf32>
    %10 = vector.extract_strided_slice %0 {offsets = [0, 38], sizes = [8, 324], strides = [1, 1]} : vector<8x384xf32> to vector<8x324xf32>
    %c0_3 = arith.constant 0 : index
    %c0_4 = arith.constant 0 : index
    %11 = memref.load %arg3[%c0_3, %c0_4] : memref<8x9xf32, #tpu.memory_space<smem>>
    %12 = vector.broadcast %11 : f32 to vector<8x324xf32>
    %13 = arith.mulf %2, %12 : vector<8x324xf32>
    %c0_5 = arith.constant 0 : index
    %c1 = arith.constant 1 : index
    %14 = memref.load %arg3[%c0_5, %c1] : memref<8x9xf32, #tpu.memory_space<smem>>
    %15 = vector.broadcast %14 : f32 to vector<8x324xf32>
    %16 = arith.mulf %3, %15 : vector<8x324xf32>
    %17 = arith.addf %13, %16 : vector<8x324xf32>
    %c0_6 = arith.constant 0 : index
    %c2 = arith.constant 2 : index
    %18 = memref.load %arg3[%c0_6, %c2] : memref<8x9xf32, #tpu.memory_space<smem>>
    %19 = vector.broadcast %18 : f32 to vector<8x324xf32>
    %20 = arith.mulf %4, %19 : vector<8x324xf32>
    %21 = arith.addf %17, %20 : vector<8x324xf32>
    %c0_7 = arith.constant 0 : index
    %c3 = arith.constant 3 : index
    %22 = memref.load %arg3[%c0_7, %c3] : memref<8x9xf32, #tpu.memory_space<smem>>
    %23 = vector.broadcast %22 : f32 to vector<8x324xf32>
    %24 = arith.mulf %5, %23 : vector<8x324xf32>
    %25 = arith.addf %21, %24 : vector<8x324xf32>
    %c0_8 = arith.constant 0 : index
    %c4 = arith.constant 4 : index
    %26 = memref.load %arg3[%c0_8, %c4] : memref<8x9xf32, #tpu.memory_space<smem>>
    %27 = vector.broadcast %26 : f32 to vector<8x324xf32>
    %28 = arith.mulf %6, %27 : vector<8x324xf32>
    %29 = arith.addf %25, %28 : vector<8x324xf32>
    %c0_9 = arith.constant 0 : index
    %c5 = arith.constant 5 : index
    %30 = memref.load %arg3[%c0_9, %c5] : memref<8x9xf32, #tpu.memory_space<smem>>
    %31 = vector.broadcast %30 : f32 to vector<8x324xf32>
    %32 = arith.mulf %7, %31 : vector<8x324xf32>
    %33 = arith.addf %29, %32 : vector<8x324xf32>
    %c0_10 = arith.constant 0 : index
    %c6 = arith.constant 6 : index
    %34 = memref.load %arg3[%c0_10, %c6] : memref<8x9xf32, #tpu.memory_space<smem>>
    %35 = vector.broadcast %34 : f32 to vector<8x324xf32>
    %36 = arith.mulf %8, %35 : vector<8x324xf32>
    %37 = arith.addf %33, %36 : vector<8x324xf32>
    %c0_11 = arith.constant 0 : index
    %c7 = arith.constant 7 : index
    %38 = memref.load %arg3[%c0_11, %c7] : memref<8x9xf32, #tpu.memory_space<smem>>
    %39 = vector.broadcast %38 : f32 to vector<8x324xf32>
    %40 = arith.mulf %9, %39 : vector<8x324xf32>
    %41 = arith.addf %37, %40 : vector<8x324xf32>
    %c0_12 = arith.constant 0 : index
    %c8 = arith.constant 8 : index
    %42 = memref.load %arg3[%c0_12, %c8] : memref<8x9xf32, #tpu.memory_space<smem>>
    %43 = vector.broadcast %42 : f32 to vector<8x324xf32>
    %44 = arith.mulf %10, %43 : vector<8x324xf32>
    %45 = arith.addf %41, %44 : vector<8x324xf32>
    %c0_13 = arith.constant 0 : index
    %46 = memref.load %arg4[%c0_13] : memref<8xf32, #tpu.memory_space<smem>>
    %47 = vector.broadcast %46 : f32 to vector<8x324xf32>
    %48 = arith.addf %45, %47 : vector<8x324xf32>
    %cst = arith.constant 0.000000e+00 : f32
    %49 = vector.broadcast %cst : f32 to vector<8x324xf32>
    %50 = arith.maximumf %48, %49 : vector<8x324xf32>
    %51 = vector.broadcast %1 : vector<1x324xf32> to vector<8x324xf32>
    %52 = arith.mulf %50, %51 : vector<8x324xf32>
    %cst_14 = arith.constant dense<0.000000e+00> : vector<8xf32>
    %53 = vector.multi_reduction <add>, %52, %cst_14 [1] : vector<8x324xf32> to vector<8xf32>
    %54 = vector.shape_cast %53 : vector<8xf32> to vector<8x1xf32>
    %c1_15 = arith.constant 1 : index
    %c0_16 = arith.constant 0 : index
    %55 = memref.load %arg3[%c1_15, %c0_16] : memref<8x9xf32, #tpu.memory_space<smem>>
    %56 = vector.broadcast %55 : f32 to vector<8x324xf32>
    %57 = arith.mulf %2, %56 : vector<8x324xf32>
    %c1_17 = arith.constant 1 : index
    %c1_18 = arith.constant 1 : index
    %58 = memref.load %arg3[%c1_17, %c1_18] : memref<8x9xf32, #tpu.memory_space<smem>>
    %59 = vector.broadcast %58 : f32 to vector<8x324xf32>
    %60 = arith.mulf %3, %59 : vector<8x324xf32>
    %61 = arith.addf %57, %60 : vector<8x324xf32>
    %c1_19 = arith.constant 1 : index
    %c2_20 = arith.constant 2 : index
    %62 = memref.load %arg3[%c1_19, %c2_20] : memref<8x9xf32, #tpu.memory_space<smem>>
    %63 = vector.broadcast %62 : f32 to vector<8x324xf32>
    %64 = arith.mulf %4, %63 : vector<8x324xf32>
    %65 = arith.addf %61, %64 : vector<8x324xf32>
    %c1_21 = arith.constant 1 : index
    %c3_22 = arith.constant 3 : index
    %66 = memref.load %arg3[%c1_21, %c3_22] : memref<8x9xf32, #tpu.memory_space<smem>>
    %67 = vector.broadcast %66 : f32 to vector<8x324xf32>
    %68 = arith.mulf %5, %67 : vector<8x324xf32>
    %69 = arith.addf %65, %68 : vector<8x324xf32>
    %c1_23 = arith.constant 1 : index
    %c4_24 = arith.constant 4 : index
    %70 = memref.load %arg3[%c1_23, %c4_24] : memref<8x9xf32, #tpu.memory_space<smem>>
    %71 = vector.broadcast %70 : f32 to vector<8x324xf32>
    %72 = arith.mulf %6, %71 : vector<8x324xf32>
    %73 = arith.addf %69, %72 : vector<8x324xf32>
    %c1_25 = arith.constant 1 : index
    %c5_26 = arith.constant 5 : index
    %74 = memref.load %arg3[%c1_25, %c5_26] : memref<8x9xf32, #tpu.memory_space<smem>>
    %75 = vector.broadcast %74 : f32 to vector<8x324xf32>
    %76 = arith.mulf %7, %75 : vector<8x324xf32>
    %77 = arith.addf %73, %76 : vector<8x324xf32>
    %c1_27 = arith.constant 1 : index
    %c6_28 = arith.constant 6 : index
    %78 = memref.load %arg3[%c1_27, %c6_28] : memref<8x9xf32, #tpu.memory_space<smem>>
    %79 = vector.broadcast %78 : f32 to vector<8x324xf32>
    %80 = arith.mulf %8, %79 : vector<8x324xf32>
    %81 = arith.addf %77, %80 : vector<8x324xf32>
    %c1_29 = arith.constant 1 : index
    %c7_30 = arith.constant 7 : index
    %82 = memref.load %arg3[%c1_29, %c7_30] : memref<8x9xf32, #tpu.memory_space<smem>>
    %83 = vector.broadcast %82 : f32 to vector<8x324xf32>
    %84 = arith.mulf %9, %83 : vector<8x324xf32>
    %85 = arith.addf %81, %84 : vector<8x324xf32>
    %c1_31 = arith.constant 1 : index
    %c8_32 = arith.constant 8 : index
    %86 = memref.load %arg3[%c1_31, %c8_32] : memref<8x9xf32, #tpu.memory_space<smem>>
    %87 = vector.broadcast %86 : f32 to vector<8x324xf32>
    %88 = arith.mulf %10, %87 : vector<8x324xf32>
    %89 = arith.addf %85, %88 : vector<8x324xf32>
    %c1_33 = arith.constant 1 : index
    %90 = memref.load %arg4[%c1_33] : memref<8xf32, #tpu.memory_space<smem>>
    %91 = vector.broadcast %90 : f32 to vector<8x324xf32>
    %92 = arith.addf %89, %91 : vector<8x324xf32>
    %cst_34 = arith.constant 0.000000e+00 : f32
    %93 = vector.broadcast %cst_34 : f32 to vector<8x324xf32>
    %94 = arith.maximumf %92, %93 : vector<8x324xf32>
    %95 = vector.broadcast %1 : vector<1x324xf32> to vector<8x324xf32>
    %96 = arith.mulf %94, %95 : vector<8x324xf32>
    %cst_35 = arith.constant dense<0.000000e+00> : vector<8xf32>
    %97 = vector.multi_reduction <add>, %96, %cst_35 [1] : vector<8x324xf32> to vector<8xf32>
    %98 = vector.shape_cast %97 : vector<8xf32> to vector<8x1xf32>
    %c2_36 = arith.constant 2 : index
    %c0_37 = arith.constant 0 : index
    %99 = memref.load %arg3[%c2_36, %c0_37] : memref<8x9xf32, #tpu.memory_space<smem>>
    %100 = vector.broadcast %99 : f32 to vector<8x324xf32>
    %101 = arith.mulf %2, %100 : vector<8x324xf32>
    %c2_38 = arith.constant 2 : index
    %c1_39 = arith.constant 1 : index
    %102 = memref.load %arg3[%c2_38, %c1_39] : memref<8x9xf32, #tpu.memory_space<smem>>
    %103 = vector.broadcast %102 : f32 to vector<8x324xf32>
    %104 = arith.mulf %3, %103 : vector<8x324xf32>
    %105 = arith.addf %101, %104 : vector<8x324xf32>
    %c2_40 = arith.constant 2 : index
    %c2_41 = arith.constant 2 : index
    %106 = memref.load %arg3[%c2_40, %c2_41] : memref<8x9xf32, #tpu.memory_space<smem>>
    %107 = vector.broadcast %106 : f32 to vector<8x324xf32>
    %108 = arith.mulf %4, %107 : vector<8x324xf32>
    %109 = arith.addf %105, %108 : vector<8x324xf32>
    %c2_42 = arith.constant 2 : index
    %c3_43 = arith.constant 3 : index
    %110 = memref.load %arg3[%c2_42, %c3_43] : memref<8x9xf32, #tpu.memory_space<smem>>
    %111 = vector.broadcast %110 : f32 to vector<8x324xf32>
    %112 = arith.mulf %5, %111 : vector<8x324xf32>
    %113 = arith.addf %109, %112 : vector<8x324xf32>
    %c2_44 = arith.constant 2 : index
    %c4_45 = arith.constant 4 : index
    %114 = memref.load %arg3[%c2_44, %c4_45] : memref<8x9xf32, #tpu.memory_space<smem>>
    %115 = vector.broadcast %114 : f32 to vector<8x324xf32>
    %116 = arith.mulf %6, %115 : vector<8x324xf32>
    %117 = arith.addf %113, %116 : vector<8x324xf32>
    %c2_46 = arith.constant 2 : index
    %c5_47 = arith.constant 5 : index
    %118 = memref.load %arg3[%c2_46, %c5_47] : memref<8x9xf32, #tpu.memory_space<smem>>
    %119 = vector.broadcast %118 : f32 to vector<8x324xf32>
    %120 = arith.mulf %7, %119 : vector<8x324xf32>
    %121 = arith.addf %117, %120 : vector<8x324xf32>
    %c2_48 = arith.constant 2 : index
    %c6_49 = arith.constant 6 : index
    %122 = memref.load %arg3[%c2_48, %c6_49] : memref<8x9xf32, #tpu.memory_space<smem>>
    %123 = vector.broadcast %122 : f32 to vector<8x324xf32>
    %124 = arith.mulf %8, %123 : vector<8x324xf32>
    %125 = arith.addf %121, %124 : vector<8x324xf32>
    %c2_50 = arith.constant 2 : index
    %c7_51 = arith.constant 7 : index
    %126 = memref.load %arg3[%c2_50, %c7_51] : memref<8x9xf32, #tpu.memory_space<smem>>
    %127 = vector.broadcast %126 : f32 to vector<8x324xf32>
    %128 = arith.mulf %9, %127 : vector<8x324xf32>
    %129 = arith.addf %125, %128 : vector<8x324xf32>
    %c2_52 = arith.constant 2 : index
    %c8_53 = arith.constant 8 : index
    %130 = memref.load %arg3[%c2_52, %c8_53] : memref<8x9xf32, #tpu.memory_space<smem>>
    %131 = vector.broadcast %130 : f32 to vector<8x324xf32>
    %132 = arith.mulf %10, %131 : vector<8x324xf32>
    %133 = arith.addf %129, %132 : vector<8x324xf32>
    %c2_54 = arith.constant 2 : index
    %134 = memref.load %arg4[%c2_54] : memref<8xf32, #tpu.memory_space<smem>>
    %135 = vector.broadcast %134 : f32 to vector<8x324xf32>
    %136 = arith.addf %133, %135 : vector<8x324xf32>
    %cst_55 = arith.constant 0.000000e+00 : f32
    %137 = vector.broadcast %cst_55 : f32 to vector<8x324xf32>
    %138 = arith.maximumf %136, %137 : vector<8x324xf32>
    %139 = vector.broadcast %1 : vector<1x324xf32> to vector<8x324xf32>
    %140 = arith.mulf %138, %139 : vector<8x324xf32>
    %cst_56 = arith.constant dense<0.000000e+00> : vector<8xf32>
    %141 = vector.multi_reduction <add>, %140, %cst_56 [1] : vector<8x324xf32> to vector<8xf32>
    %142 = vector.shape_cast %141 : vector<8xf32> to vector<8x1xf32>
    %c3_57 = arith.constant 3 : index
    %c0_58 = arith.constant 0 : index
    %143 = memref.load %arg3[%c3_57, %c0_58] : memref<8x9xf32, #tpu.memory_space<smem>>
    %144 = vector.broadcast %143 : f32 to vector<8x324xf32>
    %145 = arith.mulf %2, %144 : vector<8x324xf32>
    %c3_59 = arith.constant 3 : index
    %c1_60 = arith.constant 1 : index
    %146 = memref.load %arg3[%c3_59, %c1_60] : memref<8x9xf32, #tpu.memory_space<smem>>
    %147 = vector.broadcast %146 : f32 to vector<8x324xf32>
    %148 = arith.mulf %3, %147 : vector<8x324xf32>
    %149 = arith.addf %145, %148 : vector<8x324xf32>
    %c3_61 = arith.constant 3 : index
    %c2_62 = arith.constant 2 : index
    %150 = memref.load %arg3[%c3_61, %c2_62] : memref<8x9xf32, #tpu.memory_space<smem>>
    %151 = vector.broadcast %150 : f32 to vector<8x324xf32>
    %152 = arith.mulf %4, %151 : vector<8x324xf32>
    %153 = arith.addf %149, %152 : vector<8x324xf32>
    %c3_63 = arith.constant 3 : index
    %c3_64 = arith.constant 3 : index
    %154 = memref.load %arg3[%c3_63, %c3_64] : memref<8x9xf32, #tpu.memory_space<smem>>
    %155 = vector.broadcast %154 : f32 to vector<8x324xf32>
    %156 = arith.mulf %5, %155 : vector<8x324xf32>
    %157 = arith.addf %153, %156 : vector<8x324xf32>
    %c3_65 = arith.constant 3 : index
    %c4_66 = arith.constant 4 : index
    %158 = memref.load %arg3[%c3_65, %c4_66] : memref<8x9xf32, #tpu.memory_space<smem>>
    %159 = vector.broadcast %158 : f32 to vector<8x324xf32>
    %160 = arith.mulf %6, %159 : vector<8x324xf32>
    %161 = arith.addf %157, %160 : vector<8x324xf32>
    %c3_67 = arith.constant 3 : index
    %c5_68 = arith.constant 5 : index
    %162 = memref.load %arg3[%c3_67, %c5_68] : memref<8x9xf32, #tpu.memory_space<smem>>
    %163 = vector.broadcast %162 : f32 to vector<8x324xf32>
    %164 = arith.mulf %7, %163 : vector<8x324xf32>
    %165 = arith.addf %161, %164 : vector<8x324xf32>
    %c3_69 = arith.constant 3 : index
    %c6_70 = arith.constant 6 : index
    %166 = memref.load %arg3[%c3_69, %c6_70] : memref<8x9xf32, #tpu.memory_space<smem>>
    %167 = vector.broadcast %166 : f32 to vector<8x324xf32>
    %168 = arith.mulf %8, %167 : vector<8x324xf32>
    %169 = arith.addf %165, %168 : vector<8x324xf32>
    %c3_71 = arith.constant 3 : index
    %c7_72 = arith.constant 7 : index
    %170 = memref.load %arg3[%c3_71, %c7_72] : memref<8x9xf32, #tpu.memory_space<smem>>
    %171 = vector.broadcast %170 : f32 to vector<8x324xf32>
    %172 = arith.mulf %9, %171 : vector<8x324xf32>
    %173 = arith.addf %169, %172 : vector<8x324xf32>
    %c3_73 = arith.constant 3 : index
    %c8_74 = arith.constant 8 : index
    %174 = memref.load %arg3[%c3_73, %c8_74] : memref<8x9xf32, #tpu.memory_space<smem>>
    %175 = vector.broadcast %174 : f32 to vector<8x324xf32>
    %176 = arith.mulf %10, %175 : vector<8x324xf32>
    %177 = arith.addf %173, %176 : vector<8x324xf32>
    %c3_75 = arith.constant 3 : index
    %178 = memref.load %arg4[%c3_75] : memref<8xf32, #tpu.memory_space<smem>>
    %179 = vector.broadcast %178 : f32 to vector<8x324xf32>
    %180 = arith.addf %177, %179 : vector<8x324xf32>
    %cst_76 = arith.constant 0.000000e+00 : f32
    %181 = vector.broadcast %cst_76 : f32 to vector<8x324xf32>
    %182 = arith.maximumf %180, %181 : vector<8x324xf32>
    %183 = vector.broadcast %1 : vector<1x324xf32> to vector<8x324xf32>
    %184 = arith.mulf %182, %183 : vector<8x324xf32>
    %cst_77 = arith.constant dense<0.000000e+00> : vector<8xf32>
    %185 = vector.multi_reduction <add>, %184, %cst_77 [1] : vector<8x324xf32> to vector<8xf32>
    %186 = vector.shape_cast %185 : vector<8xf32> to vector<8x1xf32>
    %c4_78 = arith.constant 4 : index
    %c0_79 = arith.constant 0 : index
    %187 = memref.load %arg3[%c4_78, %c0_79] : memref<8x9xf32, #tpu.memory_space<smem>>
    %188 = vector.broadcast %187 : f32 to vector<8x324xf32>
    %189 = arith.mulf %2, %188 : vector<8x324xf32>
    %c4_80 = arith.constant 4 : index
    %c1_81 = arith.constant 1 : index
    %190 = memref.load %arg3[%c4_80, %c1_81] : memref<8x9xf32, #tpu.memory_space<smem>>
    %191 = vector.broadcast %190 : f32 to vector<8x324xf32>
    %192 = arith.mulf %3, %191 : vector<8x324xf32>
    %193 = arith.addf %189, %192 : vector<8x324xf32>
    %c4_82 = arith.constant 4 : index
    %c2_83 = arith.constant 2 : index
    %194 = memref.load %arg3[%c4_82, %c2_83] : memref<8x9xf32, #tpu.memory_space<smem>>
    %195 = vector.broadcast %194 : f32 to vector<8x324xf32>
    %196 = arith.mulf %4, %195 : vector<8x324xf32>
    %197 = arith.addf %193, %196 : vector<8x324xf32>
    %c4_84 = arith.constant 4 : index
    %c3_85 = arith.constant 3 : index
    %198 = memref.load %arg3[%c4_84, %c3_85] : memref<8x9xf32, #tpu.memory_space<smem>>
    %199 = vector.broadcast %198 : f32 to vector<8x324xf32>
    %200 = arith.mulf %5, %199 : vector<8x324xf32>
    %201 = arith.addf %197, %200 : vector<8x324xf32>
    %c4_86 = arith.constant 4 : index
    %c4_87 = arith.constant 4 : index
    %202 = memref.load %arg3[%c4_86, %c4_87] : memref<8x9xf32, #tpu.memory_space<smem>>
    %203 = vector.broadcast %202 : f32 to vector<8x324xf32>
    %204 = arith.mulf %6, %203 : vector<8x324xf32>
    %205 = arith.addf %201, %204 : vector<8x324xf32>
    %c4_88 = arith.constant 4 : index
    %c5_89 = arith.constant 5 : index
    %206 = memref.load %arg3[%c4_88, %c5_89] : memref<8x9xf32, #tpu.memory_space<smem>>
    %207 = vector.broadcast %206 : f32 to vector<8x324xf32>
    %208 = arith.mulf %7, %207 : vector<8x324xf32>
    %209 = arith.addf %205, %208 : vector<8x324xf32>
    %c4_90 = arith.constant 4 : index
    %c6_91 = arith.constant 6 : index
    %210 = memref.load %arg3[%c4_90, %c6_91] : memref<8x9xf32, #tpu.memory_space<smem>>
    %211 = vector.broadcast %210 : f32 to vector<8x324xf32>
    %212 = arith.mulf %8, %211 : vector<8x324xf32>
    %213 = arith.addf %209, %212 : vector<8x324xf32>
    %c4_92 = arith.constant 4 : index
    %c7_93 = arith.constant 7 : index
    %214 = memref.load %arg3[%c4_92, %c7_93] : memref<8x9xf32, #tpu.memory_space<smem>>
    %215 = vector.broadcast %214 : f32 to vector<8x324xf32>
    %216 = arith.mulf %9, %215 : vector<8x324xf32>
    %217 = arith.addf %213, %216 : vector<8x324xf32>
    %c4_94 = arith.constant 4 : index
    %c8_95 = arith.constant 8 : index
    %218 = memref.load %arg3[%c4_94, %c8_95] : memref<8x9xf32, #tpu.memory_space<smem>>
    %219 = vector.broadcast %218 : f32 to vector<8x324xf32>
    %220 = arith.mulf %10, %219 : vector<8x324xf32>
    %221 = arith.addf %217, %220 : vector<8x324xf32>
    %c4_96 = arith.constant 4 : index
    %222 = memref.load %arg4[%c4_96] : memref<8xf32, #tpu.memory_space<smem>>
    %223 = vector.broadcast %222 : f32 to vector<8x324xf32>
    %224 = arith.addf %221, %223 : vector<8x324xf32>
    %cst_97 = arith.constant 0.000000e+00 : f32
    %225 = vector.broadcast %cst_97 : f32 to vector<8x324xf32>
    %226 = arith.maximumf %224, %225 : vector<8x324xf32>
    %227 = vector.broadcast %1 : vector<1x324xf32> to vector<8x324xf32>
    %228 = arith.mulf %226, %227 : vector<8x324xf32>
    %cst_98 = arith.constant dense<0.000000e+00> : vector<8xf32>
    %229 = vector.multi_reduction <add>, %228, %cst_98 [1] : vector<8x324xf32> to vector<8xf32>
    %230 = vector.shape_cast %229 : vector<8xf32> to vector<8x1xf32>
    %c5_99 = arith.constant 5 : index
    %c0_100 = arith.constant 0 : index
    %231 = memref.load %arg3[%c5_99, %c0_100] : memref<8x9xf32, #tpu.memory_space<smem>>
    %232 = vector.broadcast %231 : f32 to vector<8x324xf32>
    %233 = arith.mulf %2, %232 : vector<8x324xf32>
    %c5_101 = arith.constant 5 : index
    %c1_102 = arith.constant 1 : index
    %234 = memref.load %arg3[%c5_101, %c1_102] : memref<8x9xf32, #tpu.memory_space<smem>>
    %235 = vector.broadcast %234 : f32 to vector<8x324xf32>
    %236 = arith.mulf %3, %235 : vector<8x324xf32>
    %237 = arith.addf %233, %236 : vector<8x324xf32>
    %c5_103 = arith.constant 5 : index
    %c2_104 = arith.constant 2 : index
    %238 = memref.load %arg3[%c5_103, %c2_104] : memref<8x9xf32, #tpu.memory_space<smem>>
    %239 = vector.broadcast %238 : f32 to vector<8x324xf32>
    %240 = arith.mulf %4, %239 : vector<8x324xf32>
    %241 = arith.addf %237, %240 : vector<8x324xf32>
    %c5_105 = arith.constant 5 : index
    %c3_106 = arith.constant 3 : index
    %242 = memref.load %arg3[%c5_105, %c3_106] : memref<8x9xf32, #tpu.memory_space<smem>>
    %243 = vector.broadcast %242 : f32 to vector<8x324xf32>
    %244 = arith.mulf %5, %243 : vector<8x324xf32>
    %245 = arith.addf %241, %244 : vector<8x324xf32>
    %c5_107 = arith.constant 5 : index
    %c4_108 = arith.constant 4 : index
    %246 = memref.load %arg3[%c5_107, %c4_108] : memref<8x9xf32, #tpu.memory_space<smem>>
    %247 = vector.broadcast %246 : f32 to vector<8x324xf32>
    %248 = arith.mulf %6, %247 : vector<8x324xf32>
    %249 = arith.addf %245, %248 : vector<8x324xf32>
    %c5_109 = arith.constant 5 : index
    %c5_110 = arith.constant 5 : index
    %250 = memref.load %arg3[%c5_109, %c5_110] : memref<8x9xf32, #tpu.memory_space<smem>>
    %251 = vector.broadcast %250 : f32 to vector<8x324xf32>
    %252 = arith.mulf %7, %251 : vector<8x324xf32>
    %253 = arith.addf %249, %252 : vector<8x324xf32>
    %c5_111 = arith.constant 5 : index
    %c6_112 = arith.constant 6 : index
    %254 = memref.load %arg3[%c5_111, %c6_112] : memref<8x9xf32, #tpu.memory_space<smem>>
    %255 = vector.broadcast %254 : f32 to vector<8x324xf32>
    %256 = arith.mulf %8, %255 : vector<8x324xf32>
    %257 = arith.addf %253, %256 : vector<8x324xf32>
    %c5_113 = arith.constant 5 : index
    %c7_114 = arith.constant 7 : index
    %258 = memref.load %arg3[%c5_113, %c7_114] : memref<8x9xf32, #tpu.memory_space<smem>>
    %259 = vector.broadcast %258 : f32 to vector<8x324xf32>
    %260 = arith.mulf %9, %259 : vector<8x324xf32>
    %261 = arith.addf %257, %260 : vector<8x324xf32>
    %c5_115 = arith.constant 5 : index
    %c8_116 = arith.constant 8 : index
    %262 = memref.load %arg3[%c5_115, %c8_116] : memref<8x9xf32, #tpu.memory_space<smem>>
    %263 = vector.broadcast %262 : f32 to vector<8x324xf32>
    %264 = arith.mulf %10, %263 : vector<8x324xf32>
    %265 = arith.addf %261, %264 : vector<8x324xf32>
    %c5_117 = arith.constant 5 : index
    %266 = memref.load %arg4[%c5_117] : memref<8xf32, #tpu.memory_space<smem>>
    %267 = vector.broadcast %266 : f32 to vector<8x324xf32>
    %268 = arith.addf %265, %267 : vector<8x324xf32>
    %cst_118 = arith.constant 0.000000e+00 : f32
    %269 = vector.broadcast %cst_118 : f32 to vector<8x324xf32>
    %270 = arith.maximumf %268, %269 : vector<8x324xf32>
    %271 = vector.broadcast %1 : vector<1x324xf32> to vector<8x324xf32>
    %272 = arith.mulf %270, %271 : vector<8x324xf32>
    %cst_119 = arith.constant dense<0.000000e+00> : vector<8xf32>
    %273 = vector.multi_reduction <add>, %272, %cst_119 [1] : vector<8x324xf32> to vector<8xf32>
    %274 = vector.shape_cast %273 : vector<8xf32> to vector<8x1xf32>
    %c6_120 = arith.constant 6 : index
    %c0_121 = arith.constant 0 : index
    %275 = memref.load %arg3[%c6_120, %c0_121] : memref<8x9xf32, #tpu.memory_space<smem>>
    %276 = vector.broadcast %275 : f32 to vector<8x324xf32>
    %277 = arith.mulf %2, %276 : vector<8x324xf32>
    %c6_122 = arith.constant 6 : index
    %c1_123 = arith.constant 1 : index
    %278 = memref.load %arg3[%c6_122, %c1_123] : memref<8x9xf32, #tpu.memory_space<smem>>
    %279 = vector.broadcast %278 : f32 to vector<8x324xf32>
    %280 = arith.mulf %3, %279 : vector<8x324xf32>
    %281 = arith.addf %277, %280 : vector<8x324xf32>
    %c6_124 = arith.constant 6 : index
    %c2_125 = arith.constant 2 : index
    %282 = memref.load %arg3[%c6_124, %c2_125] : memref<8x9xf32, #tpu.memory_space<smem>>
    %283 = vector.broadcast %282 : f32 to vector<8x324xf32>
    %284 = arith.mulf %4, %283 : vector<8x324xf32>
    %285 = arith.addf %281, %284 : vector<8x324xf32>
    %c6_126 = arith.constant 6 : index
    %c3_127 = arith.constant 3 : index
    %286 = memref.load %arg3[%c6_126, %c3_127] : memref<8x9xf32, #tpu.memory_space<smem>>
    %287 = vector.broadcast %286 : f32 to vector<8x324xf32>
    %288 = arith.mulf %5, %287 : vector<8x324xf32>
    %289 = arith.addf %285, %288 : vector<8x324xf32>
    %c6_128 = arith.constant 6 : index
    %c4_129 = arith.constant 4 : index
    %290 = memref.load %arg3[%c6_128, %c4_129] : memref<8x9xf32, #tpu.memory_space<smem>>
    %291 = vector.broadcast %290 : f32 to vector<8x324xf32>
    %292 = arith.mulf %6, %291 : vector<8x324xf32>
    %293 = arith.addf %289, %292 : vector<8x324xf32>
    %c6_130 = arith.constant 6 : index
    %c5_131 = arith.constant 5 : index
    %294 = memref.load %arg3[%c6_130, %c5_131] : memref<8x9xf32, #tpu.memory_space<smem>>
    %295 = vector.broadcast %294 : f32 to vector<8x324xf32>
    %296 = arith.mulf %7, %295 : vector<8x324xf32>
    %297 = arith.addf %293, %296 : vector<8x324xf32>
    %c6_132 = arith.constant 6 : index
    %c6_133 = arith.constant 6 : index
    %298 = memref.load %arg3[%c6_132, %c6_133] : memref<8x9xf32, #tpu.memory_space<smem>>
    %299 = vector.broadcast %298 : f32 to vector<8x324xf32>
    %300 = arith.mulf %8, %299 : vector<8x324xf32>
    %301 = arith.addf %297, %300 : vector<8x324xf32>
    %c6_134 = arith.constant 6 : index
    %c7_135 = arith.constant 7 : index
    %302 = memref.load %arg3[%c6_134, %c7_135] : memref<8x9xf32, #tpu.memory_space<smem>>
    %303 = vector.broadcast %302 : f32 to vector<8x324xf32>
    %304 = arith.mulf %9, %303 : vector<8x324xf32>
    %305 = arith.addf %301, %304 : vector<8x324xf32>
    %c6_136 = arith.constant 6 : index
    %c8_137 = arith.constant 8 : index
    %306 = memref.load %arg3[%c6_136, %c8_137] : memref<8x9xf32, #tpu.memory_space<smem>>
    %307 = vector.broadcast %306 : f32 to vector<8x324xf32>
    %308 = arith.mulf %10, %307 : vector<8x324xf32>
    %309 = arith.addf %305, %308 : vector<8x324xf32>
    %c6_138 = arith.constant 6 : index
    %310 = memref.load %arg4[%c6_138] : memref<8xf32, #tpu.memory_space<smem>>
    %311 = vector.broadcast %310 : f32 to vector<8x324xf32>
    %312 = arith.addf %309, %311 : vector<8x324xf32>
    %cst_139 = arith.constant 0.000000e+00 : f32
    %313 = vector.broadcast %cst_139 : f32 to vector<8x324xf32>
    %314 = arith.maximumf %312, %313 : vector<8x324xf32>
    %315 = vector.broadcast %1 : vector<1x324xf32> to vector<8x324xf32>
    %316 = arith.mulf %314, %315 : vector<8x324xf32>
    %cst_140 = arith.constant dense<0.000000e+00> : vector<8xf32>
    %317 = vector.multi_reduction <add>, %316, %cst_140 [1] : vector<8x324xf32> to vector<8xf32>
    %318 = vector.shape_cast %317 : vector<8xf32> to vector<8x1xf32>
    %c7_141 = arith.constant 7 : index
    %c0_142 = arith.constant 0 : index
    %319 = memref.load %arg3[%c7_141, %c0_142] : memref<8x9xf32, #tpu.memory_space<smem>>
    %320 = vector.broadcast %319 : f32 to vector<8x324xf32>
    %321 = arith.mulf %2, %320 : vector<8x324xf32>
    %c7_143 = arith.constant 7 : index
    %c1_144 = arith.constant 1 : index
    %322 = memref.load %arg3[%c7_143, %c1_144] : memref<8x9xf32, #tpu.memory_space<smem>>
    %323 = vector.broadcast %322 : f32 to vector<8x324xf32>
    %324 = arith.mulf %3, %323 : vector<8x324xf32>
    %325 = arith.addf %321, %324 : vector<8x324xf32>
    %c7_145 = arith.constant 7 : index
    %c2_146 = arith.constant 2 : index
    %326 = memref.load %arg3[%c7_145, %c2_146] : memref<8x9xf32, #tpu.memory_space<smem>>
    %327 = vector.broadcast %326 : f32 to vector<8x324xf32>
    %328 = arith.mulf %4, %327 : vector<8x324xf32>
    %329 = arith.addf %325, %328 : vector<8x324xf32>
    %c7_147 = arith.constant 7 : index
    %c3_148 = arith.constant 3 : index
    %330 = memref.load %arg3[%c7_147, %c3_148] : memref<8x9xf32, #tpu.memory_space<smem>>
    %331 = vector.broadcast %330 : f32 to vector<8x324xf32>
    %332 = arith.mulf %5, %331 : vector<8x324xf32>
    %333 = arith.addf %329, %332 : vector<8x324xf32>
    %c7_149 = arith.constant 7 : index
    %c4_150 = arith.constant 4 : index
    %334 = memref.load %arg3[%c7_149, %c4_150] : memref<8x9xf32, #tpu.memory_space<smem>>
    %335 = vector.broadcast %334 : f32 to vector<8x324xf32>
    %336 = arith.mulf %6, %335 : vector<8x324xf32>
    %337 = arith.addf %333, %336 : vector<8x324xf32>
    %c7_151 = arith.constant 7 : index
    %c5_152 = arith.constant 5 : index
    %338 = memref.load %arg3[%c7_151, %c5_152] : memref<8x9xf32, #tpu.memory_space<smem>>
    %339 = vector.broadcast %338 : f32 to vector<8x324xf32>
    %340 = arith.mulf %7, %339 : vector<8x324xf32>
    %341 = arith.addf %337, %340 : vector<8x324xf32>
    %c7_153 = arith.constant 7 : index
    %c6_154 = arith.constant 6 : index
    %342 = memref.load %arg3[%c7_153, %c6_154] : memref<8x9xf32, #tpu.memory_space<smem>>
    %343 = vector.broadcast %342 : f32 to vector<8x324xf32>
    %344 = arith.mulf %8, %343 : vector<8x324xf32>
    %345 = arith.addf %341, %344 : vector<8x324xf32>
    %c7_155 = arith.constant 7 : index
    %c7_156 = arith.constant 7 : index
    %346 = memref.load %arg3[%c7_155, %c7_156] : memref<8x9xf32, #tpu.memory_space<smem>>
    %347 = vector.broadcast %346 : f32 to vector<8x324xf32>
    %348 = arith.mulf %9, %347 : vector<8x324xf32>
    %349 = arith.addf %345, %348 : vector<8x324xf32>
    %c7_157 = arith.constant 7 : index
    %c8_158 = arith.constant 8 : index
    %350 = memref.load %arg3[%c7_157, %c8_158] : memref<8x9xf32, #tpu.memory_space<smem>>
    %351 = vector.broadcast %350 : f32 to vector<8x324xf32>
    %352 = arith.mulf %10, %351 : vector<8x324xf32>
    %353 = arith.addf %349, %352 : vector<8x324xf32>
    %c7_159 = arith.constant 7 : index
    %354 = memref.load %arg4[%c7_159] : memref<8xf32, #tpu.memory_space<smem>>
    %355 = vector.broadcast %354 : f32 to vector<8x324xf32>
    %356 = arith.addf %353, %355 : vector<8x324xf32>
    %cst_160 = arith.constant 0.000000e+00 : f32
    %357 = vector.broadcast %cst_160 : f32 to vector<8x324xf32>
    %358 = arith.maximumf %356, %357 : vector<8x324xf32>
    %359 = vector.broadcast %1 : vector<1x324xf32> to vector<8x324xf32>
    %360 = arith.mulf %358, %359 : vector<8x324xf32>
    %cst_161 = arith.constant dense<0.000000e+00> : vector<8xf32>
    %361 = vector.multi_reduction <add>, %360, %cst_161 [1] : vector<8x324xf32> to vector<8xf32>
    %362 = vector.shape_cast %361 : vector<8xf32> to vector<8x1xf32>
    %363 = tpu.concatenate %54, %98, %142, %186, %230, %274, %318, %362 in 1 : vector<8x1xf32>, vector<8x1xf32>, vector<8x1xf32>, vector<8x1xf32>, vector<8x1xf32>, vector<8x1xf32>, vector<8x1xf32>, vector<8x1xf32> -> vector<8x8xf32>
    %c0_162 = arith.constant 0 : index
    %c0_163 = arith.constant 0 : index
    %364 = vector.load %arg5[%c0_162, %c0_163] : memref<8x10xf32, #tpu.memory_space<vmem>>, vector<8x10xf32>
    %cst_164 = arith.constant dense<0.000000e+00> : vector<8x10xf32>
    %365 = tpu.matmul %363, %364, %cst_164 {dimension_numbers = #tpu.dot_dimension_numbers<[1], [0], [0], [1], [0, 0, 1, 1], [], []>} : vector<8x8xf32>, vector<8x10xf32>, vector<8x10xf32> -> vector<8x10xf32>
    %c0_165 = arith.constant 0 : index
    %c0_166 = arith.constant 0 : index
    %366 = vector.load %arg6[%c0_165, %c0_166] : memref<1x10xf32, #tpu.memory_space<vmem>>, vector<1x10xf32>
    %367 = vector.broadcast %366 : vector<1x10xf32> to vector<8x10xf32>
    %368 = arith.addf %365, %367 : vector<8x10xf32>
    %c0_167 = arith.constant 0 : index
    %c0_168 = arith.constant 0 : index
    %369 = vector.load %arg7[%c0_167, %c0_168] : memref<8x10xf32, #tpu.memory_space<vmem>>, vector<8x10xf32>
    tpu.vector_store %arg7[%c0_167, %c0_168], %368 {strides = array<i32>} : memref<8x10xf32, #tpu.memory_space<vmem>>, vector<8x10xf32>,
    return
  }
  func.func @transform_0(%arg0: i32) -> (i32, i32) {
    %c0_i32 = arith.constant 0 : i32
    %c0_i32_0 = arith.constant 0 : i32
    return %arg0, %c0_i32 : i32, i32
  }
  func.func @transform_1(%arg0: i32) -> (i32, i32) {
    %c0_i32 = arith.constant 0 : i32
    %c0_i32_0 = arith.constant 0 : i32
    %c0_i32_1 = arith.constant 0 : i32
    return %c0_i32, %c0_i32_0 : i32, i32
  }
  func.func @transform_2(%arg0: i32) -> (i32, i32) {
    %c0_i32 = arith.constant 0 : i32
    %c0_i32_0 = arith.constant 0 : i32
    %c0_i32_1 = arith.constant 0 : i32
    return %c0_i32, %c0_i32_0 : i32, i32
  }
  func.func @transform_3(%arg0: i32) -> i32 {
    %c0_i32 = arith.constant 0 : i32
    %c0_i32_0 = arith.constant 0 : i32
    return %c0_i32 : i32
  }
  func.func @transform_4(%arg0: i32) -> (i32, i32) {
    %c0_i32 = arith.constant 0 : i32
    %c0_i32_0 = arith.constant 0 : i32
    %c0_i32_1 = arith.constant 0 : i32
    return %c0_i32, %c0_i32_0 : i32, i32
  }
  func.func @transform_5(%arg0: i32) -> (i32, i32) {
    %c0_i32 = arith.constant 0 : i32
    %c0_i32_0 = arith.constant 0 : i32
    %c0_i32_1 = arith.constant 0 : i32
    return %c0_i32, %c0_i32_0 : i32, i32
  }
  func.func @transform_6(%arg0: i32) -> (i32, i32) {
    %c0_i32 = arith.constant 0 : i32
    %c0_i32_0 = arith.constant 0 : i32
    return %arg0, %c0_i32 : i32, i32
  }
}

</mosaic_0001>

<llo_original>
// kernel: stack_tailored_forward.1
$region0: #{stack_tailored_forward.1}
  #allocation0 [shape = 'u32[]', space=smem, size = 0x4, offset = 0x4, fixed_abs, tag = 'smem constant byte address 0x4 - core index']
  #allocation1 [shape = 'u32[72,128]{1,0:T(1,128)}', space=vmem, size = 0x9000, scoped, tag = 'internal scratch']
  %s0 = inlined_call_operand.vmem [shape: f32[16,384], index: 0, kind: input, shape index: {}]
  %s1 = inlined_call_operand.vmem [shape: f32[1,324], index: 1, kind: input, shape index: {}]
  %s2 = inlined_call_operand.vmem [shape: f32[8,9], index: 2, kind: input, shape index: {}]
  %s3 = inlined_call_operand.vmem [shape: f32[8], index: 3, kind: input, shape index: {}]
  %s4 = inlined_call_operand.vmem [shape: f32[8,10], index: 4, kind: input, shape index: {}]
  %s5 = inlined_call_operand.vmem [shape: f32[1,10], index: 5, kind: input, shape index: {}]
  %s6 = inlined_call_operand.vmem [shape: f32[16,10], index: 6, kind: output, shape index: {}]
  %s7 = sld [smem:[#allocation0]]
  $region65: #{stack_tailored_forward.1} parent=0
    _
  %s9 = ssub.s32 1, %s7
  %s10 = scalar_select 0, %s9, %s7
  $region1: #{stack_tailored_forward.1} parent=0
    #allocation2 [shape = 'u8[4096]{0}', space=smem, size = 0x1000, scoped, tag = 'input window, operand 2, single buffered']
    #allocation3 [shape = 's32[2]{0}', space=sflag, size = 0x8, scoped, tag = 'scoped memory for stack_tailored_forward.1']
    #allocation4 [shape = 'u8[512]{0}', space=smem, size = 0x200, scoped, tag = 'input window, operand 3, single buffered']
    #allocation5 [shape = 's32[1]{0}', space=sflag, size = 0x4, scoped, tag = 'scoped memory for stack_tailored_forward.1']
    %11 = vsyncpa [#allocation3], 0
    %12 = vsyncpa [#allocation5], 0
    loop: start=0, step=1, limit=4
    $region2: #{stack_tailored_forward.1} parent=1 // loop_pre_header
      _
    $region3: #{stack_tailored_forward.1} parent=1 // loop_header
      %s14 = sphi 0, %s18
      %p15 = scmp.ge.s32.totalorder %s14, 4
      %s24 = sphi 0, %s26
      %s27 = sphi 0, %s24
      %s28 = sphi 0, %s27
      %s44 = sphi 0, %s28
      %s48 = sphi 0, %s48
      %s50 = sphi 0, %s48
      %s51 = sphi 0, %s50
      %s65 = sphi 0, %s51
      %s69 = sphi 0, %s69
      %s71 = sphi 0, %s69
      %s72 = sphi 0, %s71
      %s86 = sphi 0, %s72
      %s90 = sphi 0, %s90
      %s92 = sphi 0, %s90
      %s93 = sphi 0, %s92
      %s107 = sphi 0, %s93
      %s111 = sphi 0, %s111
      %s113 = sphi 0, %s111
      %s114 = sphi 0, %s113
      %s128 = sphi 0, %s114
      %s132 = sphi 0, %s132
      %s134 = sphi 0, %s132
      %s135 = sphi 0, %s134
      %s149 = sphi 0, %s135
      %s155 = sphi 0, %s157
      %s158 = sphi 0, %s155
      %s159 = sphi 0, %s158
      %s175 = sphi 0, %s159
    $region4: #{stack_tailored_forward.1} parent=1 // loop_header_branch
      %17 = sbr.rel (%p15) target = $region8
    $region5: #{stack_tailored_forward.1} parent=1 // loop_body
      %s19 = ssub.s32 %s14, 1
      %s20 = ssub.s32 %s14, 2
      %s21 = sadd.s32 %s14, 1
      %s22 = ssub.s32 %s14, %s21
      %p23 = scmp.eq.s32.totalorder %s22, 0
      %s25 = sadd.s32 %s24, 1
      %s26 = scalar_select %p23, %s24, %s25
      %p29 = pneg %p23
      %p30 = scmp.eq.s32.totalorder %s14, 1
      %p31 = por %p29, %p30
      %p32 = scmp.ne.s32.totalorder %s24, %s27
      %p33 = scmp.eq.s32.totalorder %s14, 0
      %p34 = por %p32, %p33
      %p35 = scmp.ne.s32.totalorder %s24, %s27
      %p36 = scmp.eq.s32.totalorder %s19, 1
      %p37 = por %p35, %p36
      %p38 = scmp.ne.s32.totalorder %s27, %s28
      %p39 = scmp.eq.s32.totalorder %s19, 0
      %p40 = por %p38, %p39
      %p41 = scmp.ne.s32.totalorder %s27, %s28
      %p42 = scmp.eq.s32.totalorder %s20, 1
      %p43 = por %p41, %p42
      %p45 = scmp.ne.s32.totalorder %s28, %s44
      %p46 = scmp.eq.s32.totalorder %s20, 0
      %p47 = por %p45, %p46
      %s49 = sadd.s32 %s48, 1
      %p52 = scmp.eq.s32.totalorder %s14, 1
      %p53 = scmp.ne.s32.totalorder %s48, %s50
      %p54 = scmp.eq.s32.totalorder %s14, 0
      %p55 = por %p53, %p54
      %p56 = scmp.ne.s32.totalorder %s48, %s50
      %p57 = scmp.eq.s32.totalorder %s19, 1
      %p58 = por %p56, %p57
      %p59 = scmp.ne.s32.totalorder %s50, %s51
      %p60 = scmp.eq.s32.totalorder %s19, 0
      %p61 = por %p59, %p60
      %p62 = scmp.ne.s32.totalorder %s50, %s51
      %p63 = scmp.eq.s32.totalorder %s20, 1
      %p64 = por %p62, %p63
      %p66 = scmp.ne.s32.totalorder %s51, %s65
      %p67 = scmp.eq.s32.totalorder %s20, 0
      %p68 = por %p66, %p67
      %s70 = sadd.s32 %s69, 1
      %p73 = scmp.eq.s32.totalorder %s14, 1
      %p74 = scmp.ne.s32.totalorder %s69, %s71
      %p75 = scmp.eq.s32.totalorder %s14, 0
      %p76 = por %p74, %p75
      %p77 = scmp.ne.s32.totalorder %s69, %s71
      %p78 = scmp.eq.s32.totalorder %s19, 1
      %p79 = por %p77, %p78
      %p80 = scmp.ne.s32.totalorder %s71, %s72
      %p81 = scmp.eq.s32.totalorder %s19, 0
      %p82 = por %p80, %p81
      %p83 = scmp.ne.s32.totalorder %s71, %s72
      %p84 = scmp.eq.s32.totalorder %s20, 1
      %p85 = por %p83, %p84
      %p87 = scmp.ne.s32.totalorder %s72, %s86
      %p88 = scmp.eq.s32.totalorder %s20, 0
      %p89 = por %p87, %p88
      %s91 = sadd.s32 %s90, 1
      %p94 = scmp.eq.s32.totalorder %s14, 1
      %p95 = scmp.ne.s32.totalorder %s90, %s92
      %p96 = scmp.eq.s32.totalorder %s14, 0
      %p97 = por %p95, %p96
      %p98 = scmp.ne.s32.totalorder %s90, %s92
      %p99 = scmp.eq.s32.totalorder %s19, 1
      %p100 = por %p98, %p99
      %p101 = scmp.ne.s32.totalorder %s92, %s93
      %p102 = scmp.eq.s32.totalorder %s19, 0
      %p103 = por %p101, %p102
      %p104 = scmp.ne.s32.totalorder %s92, %s93
      %p105 = scmp.eq.s32.totalorder %s20, 1
      %p106 = por %p104, %p105
      %p108 = scmp.ne.s32.totalorder %s93, %s107
      %p109 = scmp.eq.s32.totalorder %s20, 0
      %p110 = por %p108, %p109
      %s112 = sadd.s32 %s111, 1
      %p115 = scmp.eq.s32.totalorder %s14, 1
      %p116 = scmp.ne.s32.totalorder %s111, %s113
      %p117 = scmp.eq.s32.totalorder %s14, 0
      %p118 = por %p116, %p117
      %p119 = scmp.ne.s32.totalorder %s111, %s113
      %p120 = scmp.eq.s32.totalorder %s19, 1
      %p121 = por %p119, %p120
      %p122 = scmp.ne.s32.totalorder %s113, %s114
      %p123 = scmp.eq.s32.totalorder %s19, 0
      %p124 = por %p122, %p123
      %p125 = scmp.ne.s32.totalorder %s113, %s114
      %p126 = scmp.eq.s32.totalorder %s20, 1
      %p127 = por %p125, %p126
      %p129 = scmp.ne.s32.totalorder %s114, %s128
      %p130 = scmp.eq.s32.totalorder %s20, 0
      %p131 = por %p129, %p130
      %s133 = sadd.s32 %s132, 1
      %p136 = scmp.eq.s32.totalorder %s14, 1
      %p137 = scmp.ne.s32.totalorder %s132, %s134
      %p138 = scmp.eq.s32.totalorder %s14, 0
      %p139 = por %p137, %p138
      %p140 = scmp.ne.s32.totalorder %s132, %s134
      %p141 = scmp.eq.s32.totalorder %s19, 1
      %p142 = por %p140, %p141
      %p143 = scmp.ne.s32.totalorder %s134, %s135
      %p144 = scmp.eq.s32.totalorder %s19, 0
      %p145 = por %p143, %p144
      %p146 = scmp.ne.s32.totalorder %s134, %s135
      %p147 = scmp.eq.s32.totalorder %s20, 1
      %p148 = por %p146, %p147
      %p150 = scmp.ne.s32.totalorder %s135, %s149
      %p151 = scmp.eq.s32.totalorder %s20, 0
      %p152 = por %p150, %p151
      %s153 = ssub.s32 %s14, %s21
      %p154 = scmp.eq.s32.totalorder %s153, 0
      %s156 = sadd.s32 %s155, 1
      %s157 = scalar_select %p154, %s155, %s156
      %p160 = pneg %p154
      %p161 = scmp.eq.s32.totalorder %s14, 1
      %p162 = por %p160, %p161
      %p163 = scmp.ne.s32.totalorder %s155, %s158
      %p164 = scmp.eq.s32.totalorder %s14, 0
      %p165 = por %p163, %p164
      %p166 = scmp.ne.s32.totalorder %s155, %s158
      %p167 = scmp.eq.s32.totalorder %s19, 1
      %p168 = por %p166, %p167
      %p169 = scmp.ne.s32.totalorder %s158, %s159
      %p170 = scmp.eq.s32.totalorder %s19, 0
      %p171 = por %p169, %p170
      %p172 = scmp.ne.s32.totalorder %s158, %s159
      %p173 = scmp.eq.s32.totalorder %s20, 1
      %p174 = por %p172, %p173
      %p176 = scmp.ne.s32.totalorder %s159, %s175
      %p177 = scmp.eq.s32.totalorder %s20, 0
      %p178 = por %p176, %p177
      %p179 = scmp.le.s32.totalorder 1, %s14
      %p180 = scmp.lt.s32.totalorder %s14, 3
      %p181 = pnand %p179, %p180
      %p182 = pneg %p181
      // Predicated region
      $region9: #{stack_tailored_forward.1} parent=5 // pred_check
        _
      $region10: #{stack_tailored_forward.1} parent=5 // pred_check_branch
        %184 = sbr.rel (%p181) target = $region12
      $region11: #{stack_tailored_forward.1} parent=5 // pred_region
        %s185 = ssub.s32 %s14, 1
        // Predicated region
        $region13: #{stack_tailored_forward.1} parent=11 // pred_check
          %p186 = pneg %p61
        $region14: #{stack_tailored_forward.1} parent=11 // pred_check_branch
          %188 = sbr.rel (%p186) target = $region16
        $region15: #{stack_tailored_forward.1} parent=11 // pred_region
          _
        $region16: #{stack_tailored_forward.1} parent=11 // pred_fallthru
          _
        // Predicated region
        $region17: #{stack_tailored_forward.1} parent=11 // pred_check
          %p189 = pneg %p82
        $region18: #{stack_tailored_forward.1} parent=11 // pred_check_branch
          %191 = sbr.rel (%p189) target = $region20
        $region19: #{stack_tailored_forward.1} parent=11 // pred_region
          %193 = vsyncadd [#allocation3], 0
          %s195 = sshll.u32 %s2, 4
          %s196 = int_to_ptr.vmem [resolvable:$true] %s195
          %198 = dma.vmem_to_smem %s196, 128, [#allocation2], [#allocation3]
        $region20: #{stack_tailored_forward.1} parent=11 // pred_fallthru
          _
        // Predicated region
        $region21: #{stack_tailored_forward.1} parent=11 // pred_check
          %p199 = pneg %p103
        $region22: #{stack_tailored_forward.1} parent=11 // pred_check_branch
          %201 = sbr.rel (%p199) target = $region24
        $region23: #{stack_tailored_forward.1} parent=11 // pred_region
          %203 = vsyncadd [#allocation5], 0
          %s205 = sshll.u32 %s3, 4
          %s206 = int_to_ptr.vmem [resolvable:$true] %s205
          %208 = dma.vmem_to_smem %s206, 16, [#allocation4], [#allocation5]
        $region24: #{stack_tailored_forward.1} parent=11 // pred_fallthru
          _
        // Predicated region
        $region25: #{stack_tailored_forward.1} parent=11 // pred_check
          %p209 = pneg %p124
        $region26: #{stack_tailored_forward.1} parent=11 // pred_check_branch
          %211 = sbr.rel (%p209) target = $region28
        $region27: #{stack_tailored_forward.1} parent=11 // pred_region
          _
        $region28: #{stack_tailored_forward.1} parent=11 // pred_fallthru
          _
        // Predicated region
        $region29: #{stack_tailored_forward.1} parent=11 // pred_check
          %p212 = pneg %p145
        $region30: #{stack_tailored_forward.1} parent=11 // pred_check_branch
          %214 = sbr.rel (%p212) target = $region32
        $region31: #{stack_tailored_forward.1} parent=11 // pred_region
          _
        $region32: #{stack_tailored_forward.1} parent=11 // pred_fallthru
          _
      $region12: #{stack_tailored_forward.1} parent=5 // pred_fallthru
        _
      %p215 = scmp.lt.s32.totalorder %s14, 2
      // Predicated region
      $region33: #{stack_tailored_forward.1} parent=5 // pred_check
        %p216 = pneg %p215
      $region34: #{stack_tailored_forward.1} parent=5 // pred_check_branch
        %218 = sbr.rel (%p216) target = $region36
      $region35: #{stack_tailored_forward.1} parent=5 // pred_region
        // Predicated region
        $region37: #{stack_tailored_forward.1} parent=35 // pred_check
          %p219 = pneg %p34
        $region38: #{stack_tailored_forward.1} parent=35 // pred_check_branch
          %221 = sbr.rel (%p219) target = $region40
        $region39: #{stack_tailored_forward.1} parent=35 // pred_region
          %p222 = scmp.lt.s32.totalorder %s14, 1
          %s223 = scalar_select %p222, %s14, 1
          %s224 = smul.addr %s223, 3
          %s225 = smul.addr %s224, 8
          %s226 = scalar_lea.vmem %s0, %s225
        $region40: #{stack_tailored_forward.1} parent=35 // pred_fallthru
          _
      $region36: #{stack_tailored_forward.1} parent=5 // pred_fallthru
        _
      %p227 = scmp.le.s32.totalorder 1, %s14
      %p228 = scmp.lt.s32.totalorder %s14, 3
      %p229 = pnand %p227, %p228
      %p230 = pneg %p229
      // Predicated region
      $region41: #{stack_tailored_forward.1} parent=5 // pred_check
        _
      $region42: #{stack_tailored_forward.1} parent=5 // pred_check_branch
        %232 = sbr.rel (%p229) target = $region44
      $region43: #{stack_tailored_forward.1} parent=5 // pred_region
        %s233 = ssub.s32 %s14, 1
        // Predicated region
        $region45: #{stack_tailored_forward.1} parent=43 // pred_check
          %p234 = pneg %p82
        $region46: #{stack_tailored_forward.1} parent=43 // pred_check_branch
          %236 = sbr.rel (%p234) target = $region48
        $region47: #{stack_tailored_forward.1} parent=43 // pred_region
          %238 = dma.done [#allocation3], 128
        $region48: #{stack_tailored_forward.1} parent=43 // pred_fallthru
          _
        // Predicated region
        $region49: #{stack_tailored_forward.1} parent=43 // pred_check
          %p239 = pneg %p103
        $region50: #{stack_tailored_forward.1} parent=43 // pred_check_branch
          %241 = sbr.rel (%p239) target = $region52
        $region51: #{stack_tailored_forward.1} parent=43 // pred_region
          %243 = dma.done [#allocation5], 16
        $region52: #{stack_tailored_forward.1} parent=43 // pred_fallthru
          _
        %244 = sfence
        %p245 = scmp.lt.s32.totalorder %s19, 1
        %s246 = scalar_select %p245, %s19, 1
        %s247 = smul.addr %s246, 3
        %s248 = smul.addr %s247, 8
        %s249 = scalar_lea.vmem %s0, %s248
        %p250 = pneg %p40
        %p251 = pneg %p37
        %p252 = pneg %p61
        %p253 = pneg %p58
        %p254 = pneg %p82
        %p255 = pneg %p79
        %p256 = pneg %p103
        %p257 = pneg %p100
        %p258 = pneg %p124
        %p259 = pneg %p121
        %p260 = pneg %p145
        %p261 = pneg %p142
        %p262 = pneg %p171
        %p263 = pneg %p168
        %p264 = scmp.lt.s32.totalorder %s19, 1
        %s265 = scalar_select %p264, %s19, 1
        %s266 = smul.addr %s265, 8
        %s267 = scalar_lea.vmem %s6, %s266
        %p268 = scmp.lt.s32.totalorder %s19, 1
        %s269 = scalar_select %p268, %s19, 1
        %s270 = smul.addr %s269, 3
        %s271 = smul.addr %s270, 8
        %s272 = scalar_lea.vmem %s0, %s271
        %p273 = scmp.lt.s32.totalorder %s19, 1
        %s274 = scalar_select %p273, %s19, 1
        %s275 = smul.addr %s274, 8
        %s276 = scalar_lea.vmem %s6, %s275
        %v277 = vld [vmem:[%s272] sm:$0xff]
        %v278 = vld [vmem:[%s272 + $0x8] sm:$0xff]
        %v279 = vld [vmem:[%s272 + $0x10] sm:$0xff]
        %v280 = vld [vmem:[%s1] sm:$0x7]
        %s281 = sld [smem:[#allocation2]]
        %v282 = vstv %s281
        %v283 = vmul.f32 %v277, %v282
        %v284 = vmul.f32 %v278, %v282
        %v285 = vmul.f32 %v279, %v282
        %s286 = sld [smem:[#allocation2 + $0x1]]
        %v287 = vstv %s286
        %v288 = vmul.f32 %v277, %v287
        %v289 = vmul.f32 %v278, %v287
        %v290 = vmul.f32 %v279, %v287
        %294 = vrot.lane.b32.xlu0 %v288, 127
        %v295 = vpop.permute.xlu0 %294
        %296 = vrot.lane.b32.xlu0 %v289, 127
        %v297 = vpop.permute.xlu0 %296
        %298 = vrot.lane.b32.xlu0 %v290, 127
        %v299 = vpop.permute.xlu0 %298
        %vm300 = vcmask 1039360
        %v301 = vsel %vm300, %v295, %v297
        %v302 = vsel %vm300, %v297, %v299
        %v306 = vadd.f32 %v283, %v301
        %v307 = vadd.f32 %v284, %v302
        %v308 = vadd.f32 %v285, %v299
        %s309 = sld [smem:[#allocation2 + $0x2]]
        %v310 = vstv %s309
        %v311 = vmul.f32 %v277, %v310
        %v312 = vmul.f32 %v278, %v310
        %v313 = vmul.f32 %v279, %v310
        %317 = vrot.lane.b32.xlu0 %v311, 126
        %v318 = vpop.permute.xlu0 %317
        %319 = vrot.lane.b32.xlu0 %v312, 126
        %v320 = vpop.permute.xlu0 %319
        %321 = vrot.lane.b32.xlu0 %v313, 126
        %v322 = vpop.permute.xlu0 %321
        %vm323 = vcmask 1031168
        %v324 = vsel %vm323, %v318, %v320
        %v325 = vsel %vm323, %v320, %v322
        %v329 = vadd.f32 %v306, %v324
        %v330 = vadd.f32 %v307, %v325
        %v331 = vadd.f32 %v308, %v322
        %s332 = sld [smem:[#allocation2 + $0x3]]
        %v333 = vstv %s332
        %v334 = vmul.f32 %v277, %v333
        %v335 = vmul.f32 %v278, %v333
        %v336 = vmul.f32 %v279, %v333
        %340 = vrot.lane.b32.xlu0 %v334, 110
        %v341 = vpop.permute.xlu0 %340
        %342 = vrot.lane.b32.xlu0 %v335, 110
        %v343 = vpop.permute.xlu0 %342
        %344 = vrot.lane.b32.xlu0 %v336, 110
        %v345 = vpop.permute.xlu0 %344
        %vm346 = vcmask 900096
        %v347 = vsel %vm346, %v341, %v343
        %v348 = vsel %vm346, %v343, %v345
        %v352 = vadd.f32 %v329, %v347
        %v353 = vadd.f32 %v330, %v348
        %v354 = vadd.f32 %v331, %v345
        %s355 = sld [smem:[#allocation2 + $0x4]]
        %v356 = vstv %s355
        %v357 = vmul.f32 %v277, %v356
        %v358 = vmul.f32 %v278, %v356
        %v359 = vmul.f32 %v279, %v356
        %363 = vrot.lane.b32.xlu0 %v357, 109
        %v364 = vpop.permute.xlu0 %363
        %365 = vrot.lane.b32.xlu0 %v358, 109
        %v366 = vpop.permute.xlu0 %365
        %367 = vrot.lane.b32.xlu0 %v359, 109
        %v368 = vpop.permute.xlu0 %367
        %vm369 = vcmask 891904
        %v370 = vsel %vm369, %v364, %v366
        %v371 = vsel %vm369, %v366, %v368
        %v375 = vadd.f32 %v352, %v370
        %v376 = vadd.f32 %v353, %v371
        %v377 = vadd.f32 %v354, %v368
        %s378 = sld [smem:[#allocation2 + $0x5]]
        %v379 = vstv %s378
        %v380 = vmul.f32 %v277, %v379
        %v381 = vmul.f32 %v278, %v379
        %v382 = vmul.f32 %v279, %v379
        %386 = vrot.lane.b32.xlu0 %v380, 108
        %v387 = vpop.permute.xlu0 %386
        %388 = vrot.lane.b32.xlu0 %v381, 108
        %v389 = vpop.permute.xlu0 %388
        %390 = vrot.lane.b32.xlu0 %v382, 108
        %v391 = vpop.permute.xlu0 %390
        %vm392 = vcmask 883712
        %v393 = vsel %vm392, %v387, %v389
        %v394 = vsel %vm392, %v389, %v391
        %v398 = vadd.f32 %v375, %v393
        %v399 = vadd.f32 %v376, %v394
        %v400 = vadd.f32 %v377, %v391
        %s401 = sld [smem:[#allocation2 + $0x6]]
        %v402 = vstv %s401
        %v403 = vmul.f32 %v277, %v402
        %v404 = vmul.f32 %v278, %v402
        %v405 = vmul.f32 %v279, %v402
        %409 = vrot.lane.b32.xlu0 %v403, 92
        %v410 = vpop.permute.xlu0 %409
        %411 = vrot.lane.b32.xlu0 %v404, 92
        %v412 = vpop.permute.xlu0 %411
        %413 = vrot.lane.b32.xlu0 %v405, 92
        %v414 = vpop.permute.xlu0 %413
        %vm415 = vcmask 752640
        %v416 = vsel %vm415, %v410, %v412
        %v417 = vsel %vm415, %v412, %v414
        %v421 = vadd.f32 %v398, %v416
        %v422 = vadd.f32 %v399, %v417
        %v423 = vadd.f32 %v400, %v414
        %s424 = sld [smem:[#allocation2 + $0x7]]
        %v425 = vstv %s424
        %v426 = vmul.f32 %v277, %v425
        %v427 = vmul.f32 %v278, %v425
        %v428 = vmul.f32 %v279, %v425
        %432 = vrot.lane.b32.xlu0 %v426, 91
        %v433 = vpop.permute.xlu0 %432
        %434 = vrot.lane.b32.xlu0 %v427, 91
        %v435 = vpop.permute.xlu0 %434
        %436 = vrot.lane.b32.xlu0 %v428, 91
        %v437 = vpop.permute.xlu0 %436
        %vm438 = vcmask 744448
        %v439 = vsel %vm438, %v433, %v435
        %v440 = vsel %vm438, %v435, %v437
        %v444 = vadd.f32 %v421, %v439
        %v445 = vadd.f32 %v422, %v440
        %v446 = vadd.f32 %v423, %v437
        %s447 = sld [smem:[#allocation2 + $0x8]]
        %v448 = vstv %s447
        %v449 = vmul.f32 %v277, %v448
        %v450 = vmul.f32 %v278, %v448
        %v451 = vmul.f32 %v279, %v448
        %455 = vrot.lane.b32.xlu0 %v449, 90
        %v456 = vpop.permute.xlu0 %455
        %457 = vrot.lane.b32.xlu0 %v450, 90
        %v458 = vpop.permute.xlu0 %457
        %459 = vrot.lane.b32.xlu0 %v451, 90
        %v460 = vpop.permute.xlu0 %459
        %vm461 = vcmask 736256
        %v462 = vsel %vm461, %v456, %v458
        %v463 = vsel %vm461, %v458, %v460
        %v467 = vadd.f32 %v444, %v462
        %v468 = vadd.f32 %v445, %v463
        %v469 = vadd.f32 %v446, %v460
        %s470 = sld [smem:[#allocation4]]
        %v471 = vstv %s470
        %v472 = vadd.f32 %v467, %v471
        %v473 = vadd.f32 %v468, %v471
        %v474 = vadd.f32 %v469, %v471
        %v475 = vmax.f32 %v472, 0.0
        %v476 = vmax.f32 %v473, 0.0
        %v477 = vmax.f32 %v474, 0.0
        %v479 = vperm.slane %v280, 0
        %v480 = vperm.slane %v280, 1
        %v481 = vperm.slane %v280, 2
        %v485 = vmul.f32 %v475, %v479
        %v486 = vmul.f32 %v476, %v480
        %v487 = vmul.f32 %v477, %v481
        %v488 = vadd.f32 %v485, %v486
        %vm489 = vcmask 556032
        %v490 = vsel %vm489, %v487, 0.0
        %v491 = vadd.f32 %v488, %v490
        %492 = vadd.xlane.f32.xlu0 %v491
        %v493 = vpop.xlane.xlu0 %492
        %s494 = sld [smem:[#allocation2 + $0x80]]
        %v495 = vstv %s494
        %v496 = vmul.f32 %v277, %v495
        %v497 = vmul.f32 %v278, %v495
        %v498 = vmul.f32 %v279, %v495
        %s499 = sld [smem:[#allocation2 + $0x81]]
        %v500 = vstv %s499
        %v501 = vmul.f32 %v277, %v500
        %v502 = vmul.f32 %v278, %v500
        %v503 = vmul.f32 %v279, %v500
        %507 = vrot.lane.b32.xlu0 %v501, 127
        %v508 = vpop.permute.xlu0 %507
        %509 = vrot.lane.b32.xlu0 %v502, 127
        %v510 = vpop.permute.xlu0 %509
        %511 = vrot.lane.b32.xlu0 %v503, 127
        %v512 = vpop.permute.xlu0 %511
        %v513 = vsel %vm300, %v508, %v510
        %v514 = vsel %vm300, %v510, %v512
        %v518 = vadd.f32 %v496, %v513
        %v519 = vadd.f32 %v497, %v514
        %v520 = vadd.f32 %v498, %v512
        %s521 = sld [smem:[#allocation2 + $0x82]]
        %v522 = vstv %s521
        %v523 = vmul.f32 %v277, %v522
        %v524 = vmul.f32 %v278, %v522
        %v525 = vmul.f32 %v279, %v522
        %529 = vrot.lane.b32.xlu0 %v523, 126
        %v530 = vpop.permute.xlu0 %529
        %531 = vrot.lane.b32.xlu0 %v524, 126
        %v532 = vpop.permute.xlu0 %531
        %533 = vrot.lane.b32.xlu0 %v525, 126
        %v534 = vpop.permute.xlu0 %533
        %v535 = vsel %vm323, %v530, %v532
        %v536 = vsel %vm323, %v532, %v534
        %v540 = vadd.f32 %v518, %v535
        %v541 = vadd.f32 %v519, %v536
        %v542 = vadd.f32 %v520, %v534
        %s543 = sld [smem:[#allocation2 + $0x83]]
        %v544 = vstv %s543
        %v545 = vmul.f32 %v277, %v544
        %v546 = vmul.f32 %v278, %v544
        %v547 = vmul.f32 %v279, %v544
        %551 = vrot.lane.b32.xlu0 %v545, 110
        %v552 = vpop.permute.xlu0 %551
        %553 = vrot.lane.b32.xlu0 %v546, 110
        %v554 = vpop.permute.xlu0 %553
        %555 = vrot.lane.b32.xlu0 %v547, 110
        %v556 = vpop.permute.xlu0 %555
        %v557 = vsel %vm346, %v552, %v554
        %v558 = vsel %vm346, %v554, %v556
        %v562 = vadd.f32 %v540, %v557
        %v563 = vadd.f32 %v541, %v558
        %v564 = vadd.f32 %v542, %v556
        %s565 = sld [smem:[#allocation2 + $0x84]]
        %v566 = vstv %s565
        %v567 = vmul.f32 %v277, %v566
        %v568 = vmul.f32 %v278, %v566
        %v569 = vmul.f32 %v279, %v566
        %573 = vrot.lane.b32.xlu0 %v567, 109
        %v574 = vpop.permute.xlu0 %573
        %575 = vrot.lane.b32.xlu0 %v568, 109
        %v576 = vpop.permute.xlu0 %575
        %577 = vrot.lane.b32.xlu0 %v569, 109
        %v578 = vpop.permute.xlu0 %577
        %v579 = vsel %vm369, %v574, %v576
        %v580 = vsel %vm369, %v576, %v578
        %v584 = vadd.f32 %v562, %v579
        %v585 = vadd.f32 %v563, %v580
        %v586 = vadd.f32 %v564, %v578
        %s587 = sld [smem:[#allocation2 + $0x85]]
        %v588 = vstv %s587
        %v589 = vmul.f32 %v277, %v588
        %v590 = vmul.f32 %v278, %v588
        %v591 = vmul.f32 %v279, %v588
        %595 = vrot.lane.b32.xlu0 %v589, 108
        %v596 = vpop.permute.xlu0 %595
        %597 = vrot.lane.b32.xlu0 %v590, 108
        %v598 = vpop.permute.xlu0 %597
        %599 = vrot.lane.b32.xlu0 %v591, 108
        %v600 = vpop.permute.xlu0 %599
        %v601 = vsel %vm392, %v596, %v598
        %v602 = vsel %vm392, %v598, %v600
        %v606 = vadd.f32 %v584, %v601
        %v607 = vadd.f32 %v585, %v602
        %v608 = vadd.f32 %v586, %v600
        %s609 = sld [smem:[#allocation2 + $0x86]]
        %v610 = vstv %s609
        %v611 = vmul.f32 %v277, %v610
        %v612 = vmul.f32 %v278, %v610
        %v613 = vmul.f32 %v279, %v610
        %617 = vrot.lane.b32.xlu0 %v611, 92
        %v618 = vpop.permute.xlu0 %617
        %619 = vrot.lane.b32.xlu0 %v612, 92
        %v620 = vpop.permute.xlu0 %619
        %621 = vrot.lane.b32.xlu0 %v613, 92
        %v622 = vpop.permute.xlu0 %621
        %v623 = vsel %vm415, %v618, %v620
        %v624 = vsel %vm415, %v620, %v622
        %v628 = vadd.f32 %v606, %v623
        %v629 = vadd.f32 %v607, %v624
        %v630 = vadd.f32 %v608, %v622
        %s631 = sld [smem:[#allocation2 + $0x87]]
        %v632 = vstv %s631
        %v633 = vmul.f32 %v277, %v632
        %v634 = vmul.f32 %v278, %v632
        %v635 = vmul.f32 %v279, %v632
        %639 = vrot.lane.b32.xlu0 %v633, 91
        %v640 = vpop.permute.xlu0 %639
        %641 = vrot.lane.b32.xlu0 %v634, 91
        %v642 = vpop.permute.xlu0 %641
        %643 = vrot.lane.b32.xlu0 %v635, 91
        %v644 = vpop.permute.xlu0 %643
        %v645 = vsel %vm438, %v640, %v642
        %v646 = vsel %vm438, %v642, %v644
        %v650 = vadd.f32 %v628, %v645
        %v651 = vadd.f32 %v629, %v646
        %v652 = vadd.f32 %v630, %v644
        %s653 = sld [smem:[#allocation2 + $0x88]]
        %v654 = vstv %s653
        %v655 = vmul.f32 %v277, %v654
        %v656 = vmul.f32 %v278, %v654
        %v657 = vmul.f32 %v279, %v654
        %661 = vrot.lane.b32.xlu0 %v655, 90
        %v662 = vpop.permute.xlu0 %661
        %663 = vrot.lane.b32.xlu0 %v656, 90
        %v664 = vpop.permute.xlu0 %663
        %665 = vrot.lane.b32.xlu0 %v657, 90
        %v666 = vpop.permute.xlu0 %665
        %v667 = vsel %vm461, %v662, %v664
        %v668 = vsel %vm461, %v664, %v666
        %v672 = vadd.f32 %v650, %v667
        %v673 = vadd.f32 %v651, %v668
        %v674 = vadd.f32 %v652, %v666
        %s675 = sld [smem:[#allocation4 + $0x1]]
        %v676 = vstv %s675
        %v677 = vadd.f32 %v672, %v676
        %v678 = vadd.f32 %v673, %v676
        %v679 = vadd.f32 %v674, %v676
        %v680 = vmax.f32 %v677, 0.0
        %v681 = vmax.f32 %v678, 0.0
        %v682 = vmax.f32 %v679, 0.0
        %v683 = vmul.f32 %v680, %v479
        %v684 = vmul.f32 %v681, %v480
        %v685 = vmul.f32 %v682, %v481
        %v686 = vadd.f32 %v683, %v684
        %v687 = vsel %vm489, %v685, 0.0
        %v688 = vadd.f32 %v686, %v687
        %689 = vadd.xlane.f32.xlu0 %v688
        %v690 = vpop.xlane.xlu0 %689
        %s691 = sld [smem:[#allocation2 + $0x100]]
        %v692 = vstv %s691
        %v693 = vmul.f32 %v277, %v692
        %v694 = vmul.f32 %v278, %v692
        %v695 = vmul.f32 %v279, %v692
        %s696 = sld [smem:[#allocation2 + $0x101]]
        %v697 = vstv %s696
        %v698 = vmul.f32 %v277, %v697
        %v699 = vmul.f32 %v278, %v697
        %v700 = vmul.f32 %v279, %v697
        %704 = vrot.lane.b32.xlu0 %v698, 127
        %v705 = vpop.permute.xlu0 %704
        %706 = vrot.lane.b32.xlu0 %v699, 127
        %v707 = vpop.permute.xlu0 %706
        %708 = vrot.lane.b32.xlu0 %v700, 127
        %v709 = vpop.permute.xlu0 %708
        %v710 = vsel %vm300, %v705, %v707
        %v711 = vsel %vm300, %v707, %v709
        %v715 = vadd.f32 %v693, %v710
        %v716 = vadd.f32 %v694, %v711
        %v717 = vadd.f32 %v695, %v709
        %s718 = sld [smem:[#allocation2 + $0x102]]
        %v719 = vstv %s718
        %v720 = vmul.f32 %v277, %v719
        %v721 = vmul.f32 %v278, %v719
        %v722 = vmul.f32 %v279, %v719
        %726 = vrot.lane.b32.xlu0 %v720, 126
        %v727 = vpop.permute.xlu0 %726
        %728 = vrot.lane.b32.xlu0 %v721, 126
        %v729 = vpop.permute.xlu0 %728
        %730 = vrot.lane.b32.xlu0 %v722, 126
        %v731 = vpop.permute.xlu0 %730
        %v732 = vsel %vm323, %v727, %v729
        %v733 = vsel %vm323, %v729, %v731
        %v737 = vadd.f32 %v715, %v732
        %v738 = vadd.f32 %v716, %v733
        %v739 = vadd.f32 %v717, %v731
        %s740 = sld [smem:[#allocation2 + $0x103]]
        %v741 = vstv %s740
        %v742 = vmul.f32 %v277, %v741
        %v743 = vmul.f32 %v278, %v741
        %v744 = vmul.f32 %v279, %v741
        %748 = vrot.lane.b32.xlu0 %v742, 110
        %v749 = vpop.permute.xlu0 %748
        %750 = vrot.lane.b32.xlu0 %v743, 110
        %v751 = vpop.permute.xlu0 %750
        %752 = vrot.lane.b32.xlu0 %v744, 110
        %v753 = vpop.permute.xlu0 %752
        %v754 = vsel %vm346, %v749, %v751
        %v755 = vsel %vm346, %v751, %v753
        %v759 = vadd.f32 %v737, %v754
        %v760 = vadd.f32 %v738, %v755
        %v761 = vadd.f32 %v739, %v753
        %s762 = sld [smem:[#allocation2 + $0x104]]
        %v763 = vstv %s762
        %v764 = vmul.f32 %v277, %v763
        %v765 = vmul.f32 %v278, %v763
        %v766 = vmul.f32 %v279, %v763
        %770 = vrot.lane.b32.xlu0 %v764, 109
        %v771 = vpop.permute.xlu0 %770
        %772 = vrot.lane.b32.xlu0 %v765, 109
        %v773 = vpop.permute.xlu0 %772
        %774 = vrot.lane.b32.xlu0 %v766, 109
        %v775 = vpop.permute.xlu0 %774
        %v776 = vsel %vm369, %v771, %v773
        %v777 = vsel %vm369, %v773, %v775
        %v781 = vadd.f32 %v759, %v776
        %v782 = vadd.f32 %v760, %v777
        %v783 = vadd.f32 %v761, %v775
        %s784 = sld [smem:[#allocation2 + $0x105]]
        %v785 = vstv %s784
        %v786 = vmul.f32 %v277, %v785
        %v787 = vmul.f32 %v278, %v785
        %v788 = vmul.f32 %v279, %v785
        %792 = vrot.lane.b32.xlu0 %v786, 108
        %v793 = vpop.permute.xlu0 %792
        %794 = vrot.lane.b32.xlu0 %v787, 108
        %v795 = vpop.permute.xlu0 %794
        %796 = vrot.lane.b32.xlu0 %v788, 108
        %v797 = vpop.permute.xlu0 %796
        %v798 = vsel %vm392, %v793, %v795
        %v799 = vsel %vm392, %v795, %v797
        %v803 = vadd.f32 %v781, %v798
        %v804 = vadd.f32 %v782, %v799
        %v805 = vadd.f32 %v783, %v797
        %s806 = sld [smem:[#allocation2 + $0x106]]
        %v807 = vstv %s806
        %v808 = vmul.f32 %v277, %v807
        %v809 = vmul.f32 %v278, %v807
        %v810 = vmul.f32 %v279, %v807
        %814 = vrot.lane.b32.xlu0 %v808, 92
        %v815 = vpop.permute.xlu0 %814
        %816 = vrot.lane.b32.xlu0 %v809, 92
        %v817 = vpop.permute.xlu0 %816
        %818 = vrot.lane.b32.xlu0 %v810, 92
        %v819 = vpop.permute.xlu0 %818
        %v820 = vsel %vm415, %v815, %v817
        %v821 = vsel %vm415, %v817, %v819
        %v825 = vadd.f32 %v803, %v820
        %v826 = vadd.f32 %v804, %v821
        %v827 = vadd.f32 %v805, %v819
        %s828 = sld [smem:[#allocation2 + $0x107]]
        %v829 = vstv %s828
        %v830 = vmul.f32 %v277, %v829
        %v831 = vmul.f32 %v278, %v829
        %v832 = vmul.f32 %v279, %v829
        %836 = vrot.lane.b32.xlu0 %v830, 91
        %v837 = vpop.permute.xlu0 %836
        %838 = vrot.lane.b32.xlu0 %v831, 91
        %v839 = vpop.permute.xlu0 %838
        %840 = vrot.lane.b32.xlu0 %v832, 91
        %v841 = vpop.permute.xlu0 %840
        %v842 = vsel %vm438, %v837, %v839
        %v843 = vsel %vm438, %v839, %v841
        %v847 = vadd.f32 %v825, %v842
        %v848 = vadd.f32 %v826, %v843
        %v849 = vadd.f32 %v827, %v841
        %s850 = sld [smem:[#allocation2 + $0x108]]
        %v851 = vstv %s850
        %v852 = vmul.f32 %v277, %v851
        %v853 = vmul.f32 %v278, %v851
        %v854 = vmul.f32 %v279, %v851
        %858 = vrot.lane.b32.xlu0 %v852, 90
        %v859 = vpop.permute.xlu0 %858
        %860 = vrot.lane.b32.xlu0 %v853, 90
        %v861 = vpop.permute.xlu0 %860
        %862 = vrot.lane.b32.xlu0 %v854, 90
        %v863 = vpop.permute.xlu0 %862
        %v864 = vsel %vm461, %v859, %v861
        %v865 = vsel %vm461, %v861, %v863
        %v869 = vadd.f32 %v847, %v864
        %v870 = vadd.f32 %v848, %v865
        %v871 = vadd.f32 %v849, %v863
        %s872 = sld [smem:[#allocation4 + $0x2]]
        %v873 = vstv %s872
        %v874 = vadd.f32 %v869, %v873
        %v875 = vadd.f32 %v870, %v873
        %v876 = vadd.f32 %v871, %v873
        %v877 = vmax.f32 %v874, 0.0
        %v878 = vmax.f32 %v875, 0.0
        %v879 = vmax.f32 %v876, 0.0
        %v880 = vmul.f32 %v877, %v479
        %v881 = vmul.f32 %v878, %v480
        %v882 = vmul.f32 %v879, %v481
        %v883 = vadd.f32 %v880, %v881
        %v884 = vsel %vm489, %v882, 0.0
        %v885 = vadd.f32 %v883, %v884
        %886 = vadd.xlane.f32.xlu0 %v885
        %v887 = vpop.xlane.xlu0 %886
        %s888 = sld [smem:[#allocation2 + $0x180]]
        %v889 = vstv %s888
        %v890 = vmul.f32 %v277, %v889
        %v891 = vmul.f32 %v278, %v889
        %v892 = vmul.f32 %v279, %v889
        %s893 = sld [smem:[#allocation2 + $0x181]]
        %v894 = vstv %s893
        %v895 = vmul.f32 %v277, %v894
        %v896 = vmul.f32 %v278, %v894
        %v897 = vmul.f32 %v279, %v894
        %901 = vrot.lane.b32.xlu0 %v895, 127
        %v902 = vpop.permute.xlu0 %901
        %903 = vrot.lane.b32.xlu0 %v896, 127
        %v904 = vpop.permute.xlu0 %903
        %905 = vrot.lane.b32.xlu0 %v897, 127
        %v906 = vpop.permute.xlu0 %905
        %v907 = vsel %vm300, %v902, %v904
        %v908 = vsel %vm300, %v904, %v906
        %v912 = vadd.f32 %v890, %v907
        %v913 = vadd.f32 %v891, %v908
        %v914 = vadd.f32 %v892, %v906
        %s915 = sld [smem:[#allocation2 + $0x182]]
        %v916 = vstv %s915
        %v917 = vmul.f32 %v277, %v916
        %v918 = vmul.f32 %v278, %v916
        %v919 = vmul.f32 %v279, %v916
        %923 = vrot.lane.b32.xlu0 %v917, 126
        %v924 = vpop.permute.xlu0 %923
        %925 = vrot.lane.b32.xlu0 %v918, 126
        %v926 = vpop.permute.xlu0 %925
        %927 = vrot.lane.b32.xlu0 %v919, 126
        %v928 = vpop.permute.xlu0 %927
        %v929 = vsel %vm323, %v924, %v926
        %v930 = vsel %vm323, %v926, %v928
        %v934 = vadd.f32 %v912, %v929
        %v935 = vadd.f32 %v913, %v930
        %v936 = vadd.f32 %v914, %v928
        %s937 = sld [smem:[#allocation2 + $0x183]]
        %v938 = vstv %s937
        %v939 = vmul.f32 %v277, %v938
        %v940 = vmul.f32 %v278, %v938
        %v941 = vmul.f32 %v279, %v938
        %945 = vrot.lane.b32.xlu0 %v939, 110
        %v946 = vpop.permute.xlu0 %945
        %947 = vrot.lane.b32.xlu0 %v940, 110
        %v948 = vpop.permute.xlu0 %947
        %949 = vrot.lane.b32.xlu0 %v941, 110
        %v950 = vpop.permute.xlu0 %949
        %v951 = vsel %vm346, %v946, %v948
        %v952 = vsel %vm346, %v948, %v950
        %v956 = vadd.f32 %v934, %v951
        %v957 = vadd.f32 %v935, %v952
        %v958 = vadd.f32 %v936, %v950
        %s959 = sld [smem:[#allocation2 + $0x184]]
        %v960 = vstv %s959
        %v961 = vmul.f32 %v277, %v960
        %v962 = vmul.f32 %v278, %v960
        %v963 = vmul.f32 %v279, %v960
        %967 = vrot.lane.b32.xlu0 %v961, 109
        %v968 = vpop.permute.xlu0 %967
        %969 = vrot.lane.b32.xlu0 %v962, 109
        %v970 = vpop.permute.xlu0 %969
        %971 = vrot.lane.b32.xlu0 %v963, 109
        %v972 = vpop.permute.xlu0 %971
        %v973 = vsel %vm369, %v968, %v970
        %v974 = vsel %vm369, %v970, %v972
        %v978 = vadd.f32 %v956, %v973
        %v979 = vadd.f32 %v957, %v974
        %v980 = vadd.f32 %v958, %v972
        %s981 = sld [smem:[#allocation2 + $0x185]]
        %v982 = vstv %s981
        %v983 = vmul.f32 %v277, %v982
        %v984 = vmul.f32 %v278, %v982
        %v985 = vmul.f32 %v279, %v982
        %989 = vrot.lane.b32.xlu0 %v983, 108
        %v990 = vpop.permute.xlu0 %989
        %991 = vrot.lane.b32.xlu0 %v984, 108
        %v992 = vpop.permute.xlu0 %991
        %993 = vrot.lane.b32.xlu0 %v985, 108
        %v994 = vpop.permute.xlu0 %993
        %v995 = vsel %vm392, %v990, %v992
        %v996 = vsel %vm392, %v992, %v994
        %v1000 = vadd.f32 %v978, %v995
        %v1001 = vadd.f32 %v979, %v996
        %v1002 = vadd.f32 %v980, %v994
        %s1003 = sld [smem:[#allocation2 + $0x186]]
        %v1004 = vstv %s1003
        %v1005 = vmul.f32 %v277, %v1004
        %v1006 = vmul.f32 %v278, %v1004
        %v1007 = vmul.f32 %v279, %v1004
        %1011 = vrot.lane.b32.xlu0 %v1005, 92
        %v1012 = vpop.permute.xlu0 %1011
        %1013 = vrot.lane.b32.xlu0 %v1006, 92
        %v1014 = vpop.permute.xlu0 %1013
        %1015 = vrot.lane.b32.xlu0 %v1007, 92
        %v1016 = vpop.permute.xlu0 %1015
        %v1017 = vsel %vm415, %v1012, %v1014
        %v1018 = vsel %vm415, %v1014, %v1016
        %v1022 = vadd.f32 %v1000, %v1017
        %v1023 = vadd.f32 %v1001, %v1018
        %v1024 = vadd.f32 %v1002, %v1016
        %s1025 = sld [smem:[#allocation2 + $0x187]]
        %v1026 = vstv %s1025
        %v1027 = vmul.f32 %v277, %v1026
        %v1028 = vmul.f32 %v278, %v1026
        %v1029 = vmul.f32 %v279, %v1026
        %1033 = vrot.lane.b32.xlu0 %v1027, 91
        %v1034 = vpop.permute.xlu0 %1033
        %1035 = vrot.lane.b32.xlu0 %v1028, 91
        %v1036 = vpop.permute.xlu0 %1035
        %1037 = vrot.lane.b32.xlu0 %v1029, 91
        %v1038 = vpop.permute.xlu0 %1037
        %v1039 = vsel %vm438, %v1034, %v1036
        %v1040 = vsel %vm438, %v1036, %v1038
        %v1044 = vadd.f32 %v1022, %v1039
        %v1045 = vadd.f32 %v1023, %v1040
        %v1046 = vadd.f32 %v1024, %v1038
        %s1047 = sld [smem:[#allocation2 + $0x188]]
        %v1048 = vstv %s1047
        %v1049 = vmul.f32 %v277, %v1048
        %v1050 = vmul.f32 %v278, %v1048
        %v1051 = vmul.f32 %v279, %v1048
        %1055 = vrot.lane.b32.xlu0 %v1049, 90
        %v1056 = vpop.permute.xlu0 %1055
        %1057 = vrot.lane.b32.xlu0 %v1050, 90
        %v1058 = vpop.permute.xlu0 %1057
        %1059 = vrot.lane.b32.xlu0 %v1051, 90
        %v1060 = vpop.permute.xlu0 %1059
        %v1061 = vsel %vm461, %v1056, %v1058
        %v1062 = vsel %vm461, %v1058, %v1060
        %v1066 = vadd.f32 %v1044, %v1061
        %v1067 = vadd.f32 %v1045, %v1062
        %v1068 = vadd.f32 %v1046, %v1060
        %s1069 = sld [smem:[#allocation4 + $0x3]]
        %v1070 = vstv %s1069
        %v1071 = vadd.f32 %v1066, %v1070
        %v1072 = vadd.f32 %v1067, %v1070
        %v1073 = vadd.f32 %v1068, %v1070
        %v1074 = vmax.f32 %v1071, 0.0
        %v1075 = vmax.f32 %v1072, 0.0
        %v1076 = vmax.f32 %v1073, 0.0
        %v1077 = vmul.f32 %v1074, %v479
        %v1078 = vmul.f32 %v1075, %v480
        %v1079 = vmul.f32 %v1076, %v481
        %v1080 = vadd.f32 %v1077, %v1078
        %v1081 = vsel %vm489, %v1079, 0.0
        %v1082 = vadd.f32 %v1080, %v1081
        %1083 = vadd.xlane.f32.xlu0 %v1082
        %v1084 = vpop.xlane.xlu0 %1083
        %s1085 = sld [smem:[#allocation2 + $0x200]]
        %v1086 = vstv %s1085
        %v1087 = vmul.f32 %v277, %v1086
        %v1088 = vmul.f32 %v278, %v1086
        %v1089 = vmul.f32 %v279, %v1086
        %s1090 = sld [smem:[#allocation2 + $0x201]]
        %v1091 = vstv %s1090
        %v1092 = vmul.f32 %v277, %v1091
        %v1093 = vmul.f32 %v278, %v1091
        %v1094 = vmul.f32 %v279, %v1091
        %1098 = vrot.lane.b32.xlu0 %v1092, 127
        %v1099 = vpop.permute.xlu0 %1098
        %1100 = vrot.lane.b32.xlu0 %v1093, 127
        %v1101 = vpop.permute.xlu0 %1100
        %1102 = vrot.lane.b32.xlu0 %v1094, 127
        %v1103 = vpop.permute.xlu0 %1102
        %v1104 = vsel %vm300, %v1099, %v1101
        %v1105 = vsel %vm300, %v1101, %v1103
        %v1109 = vadd.f32 %v1087, %v1104
        %v1110 = vadd.f32 %v1088, %v1105
        %v1111 = vadd.f32 %v1089, %v1103
        %s1112 = sld [smem:[#allocation2 + $0x202]]
        %v1113 = vstv %s1112
        %v1114 = vmul.f32 %v277, %v1113
        %v1115 = vmul.f32 %v278, %v1113
        %v1116 = vmul.f32 %v279, %v1113
        %1120 = vrot.lane.b32.xlu0 %v1114, 126
        %v1121 = vpop.permute.xlu0 %1120
        %1122 = vrot.lane.b32.xlu0 %v1115, 126
        %v1123 = vpop.permute.xlu0 %1122
        %1124 = vrot.lane.b32.xlu0 %v1116, 126
        %v1125 = vpop.permute.xlu0 %1124
        %v1126 = vsel %vm323, %v1121, %v1123
        %v1127 = vsel %vm323, %v1123, %v1125
        %v1131 = vadd.f32 %v1109, %v1126
        %v1132 = vadd.f32 %v1110, %v1127
        %v1133 = vadd.f32 %v1111, %v1125
        %s1134 = sld [smem:[#allocation2 + $0x203]]
        %v1135 = vstv %s1134
        %v1136 = vmul.f32 %v277, %v1135
        %v1137 = vmul.f32 %v278, %v1135
        %v1138 = vmul.f32 %v279, %v1135
        %1142 = vrot.lane.b32.xlu0 %v1136, 110
        %v1143 = vpop.permute.xlu0 %1142
        %1144 = vrot.lane.b32.xlu0 %v1137, 110
        %v1145 = vpop.permute.xlu0 %1144
        %1146 = vrot.lane.b32.xlu0 %v1138, 110
        %v1147 = vpop.permute.xlu0 %1146
        %v1148 = vsel %vm346, %v1143, %v1145
        %v1149 = vsel %vm346, %v1145, %v1147
        %v1153 = vadd.f32 %v1131, %v1148
        %v1154 = vadd.f32 %v1132, %v1149
        %v1155 = vadd.f32 %v1133, %v1147
        %s1156 = sld [smem:[#allocation2 + $0x204]]
        %v1157 = vstv %s1156
        %v1158 = vmul.f32 %v277, %v1157
        %v1159 = vmul.f32 %v278, %v1157
        %v1160 = vmul.f32 %v279, %v1157
        %1164 = vrot.lane.b32.xlu0 %v1158, 109
        %v1165 = vpop.permute.xlu0 %1164
        %1166 = vrot.lane.b32.xlu0 %v1159, 109
        %v1167 = vpop.permute.xlu0 %1166
        %1168 = vrot.lane.b32.xlu0 %v1160, 109
        %v1169 = vpop.permute.xlu0 %1168
        %v1170 = vsel %vm369, %v1165, %v1167
        %v1171 = vsel %vm369, %v1167, %v1169
        %v1175 = vadd.f32 %v1153, %v1170
        %v1176 = vadd.f32 %v1154, %v1171
        %v1177 = vadd.f32 %v1155, %v1169
        %s1178 = sld [smem:[#allocation2 + $0x205]]
        %v1179 = vstv %s1178
        %v1180 = vmul.f32 %v277, %v1179
        %v1181 = vmul.f32 %v278, %v1179
        %v1182 = vmul.f32 %v279, %v1179
        %1186 = vrot.lane.b32.xlu0 %v1180, 108
        %v1187 = vpop.permute.xlu0 %1186
        %1188 = vrot.lane.b32.xlu0 %v1181, 108
        %v1189 = vpop.permute.xlu0 %1188
        %1190 = vrot.lane.b32.xlu0 %v1182, 108
        %v1191 = vpop.permute.xlu0 %1190
        %v1192 = vsel %vm392, %v1187, %v1189
        %v1193 = vsel %vm392, %v1189, %v1191
        %v1197 = vadd.f32 %v1175, %v1192
        %v1198 = vadd.f32 %v1176, %v1193
        %v1199 = vadd.f32 %v1177, %v1191
        %s1200 = sld [smem:[#allocation2 + $0x206]]
        %v1201 = vstv %s1200
        %v1202 = vmul.f32 %v277, %v1201
        %v1203 = vmul.f32 %v278, %v1201
        %v1204 = vmul.f32 %v279, %v1201
        %1208 = vrot.lane.b32.xlu0 %v1202, 92
        %v1209 = vpop.permute.xlu0 %1208
        %1210 = vrot.lane.b32.xlu0 %v1203, 92
        %v1211 = vpop.permute.xlu0 %1210
        %1212 = vrot.lane.b32.xlu0 %v1204, 92
        %v1213 = vpop.permute.xlu0 %1212
        %v1214 = vsel %vm415, %v1209, %v1211
        %v1215 = vsel %vm415, %v1211, %v1213
        %v1219 = vadd.f32 %v1197, %v1214
        %v1220 = vadd.f32 %v1198, %v1215
        %v1221 = vadd.f32 %v1199, %v1213
        %s1222 = sld [smem:[#allocation2 + $0x207]]
        %v1223 = vstv %s1222
        %v1224 = vmul.f32 %v277, %v1223
        %v1225 = vmul.f32 %v278, %v1223
        %v1226 = vmul.f32 %v279, %v1223
        %1230 = vrot.lane.b32.xlu0 %v1224, 91
        %v1231 = vpop.permute.xlu0 %1230
        %1232 = vrot.lane.b32.xlu0 %v1225, 91
        %v1233 = vpop.permute.xlu0 %1232
        %1234 = vrot.lane.b32.xlu0 %v1226, 91
        %v1235 = vpop.permute.xlu0 %1234
        %v1236 = vsel %vm438, %v1231, %v1233
        %v1237 = vsel %vm438, %v1233, %v1235
        %v1241 = vadd.f32 %v1219, %v1236
        %v1242 = vadd.f32 %v1220, %v1237
        %v1243 = vadd.f32 %v1221, %v1235
        %s1244 = sld [smem:[#allocation2 + $0x208]]
        %v1245 = vstv %s1244
        %v1246 = vmul.f32 %v277, %v1245
        %v1247 = vmul.f32 %v278, %v1245
        %v1248 = vmul.f32 %v279, %v1245
        %1252 = vrot.lane.b32.xlu0 %v1246, 90
        %v1253 = vpop.permute.xlu0 %1252
        %1254 = vrot.lane.b32.xlu0 %v1247, 90
        %v1255 = vpop.permute.xlu0 %1254
        %1256 = vrot.lane.b32.xlu0 %v1248, 90
        %v1257 = vpop.permute.xlu0 %1256
        %v1258 = vsel %vm461, %v1253, %v1255
        %v1259 = vsel %vm461, %v1255, %v1257
        %v1263 = vadd.f32 %v1241, %v1258
        %v1264 = vadd.f32 %v1242, %v1259
        %v1265 = vadd.f32 %v1243, %v1257
        %s1266 = sld [smem:[#allocation4 + $0x4]]
        %v1267 = vstv %s1266
        %v1268 = vadd.f32 %v1263, %v1267
        %v1269 = vadd.f32 %v1264, %v1267
        %v1270 = vadd.f32 %v1265, %v1267
        %v1271 = vmax.f32 %v1268, 0.0
        %v1272 = vmax.f32 %v1269, 0.0
        %v1273 = vmax.f32 %v1270, 0.0
        %v1274 = vmul.f32 %v1271, %v479
        %v1275 = vmul.f32 %v1272, %v480
        %v1276 = vmul.f32 %v1273, %v481
        %v1277 = vadd.f32 %v1274, %v1275
        %v1278 = vsel %vm489, %v1276, 0.0
        %v1279 = vadd.f32 %v1277, %v1278
        %1280 = vadd.xlane.f32.xlu0 %v1279
        %v1281 = vpop.xlane.xlu0 %1280
        %s1282 = sld [smem:[#allocation2 + $0x280]]
        %v1283 = vstv %s1282
        %v1284 = vmul.f32 %v277, %v1283
        %v1285 = vmul.f32 %v278, %v1283
        %v1286 = vmul.f32 %v279, %v1283
        %s1287 = sld [smem:[#allocation2 + $0x281]]
        %v1288 = vstv %s1287
        %v1289 = vmul.f32 %v277, %v1288
        %v1290 = vmul.f32 %v278, %v1288
        %v1291 = vmul.f32 %v279, %v1288
        %1295 = vrot.lane.b32.xlu0 %v1289, 127
        %v1296 = vpop.permute.xlu0 %1295
        %1297 = vrot.lane.b32.xlu0 %v1290, 127
        %v1298 = vpop.permute.xlu0 %1297
        %1299 = vrot.lane.b32.xlu0 %v1291, 127
        %v1300 = vpop.permute.xlu0 %1299
        %v1301 = vsel %vm300, %v1296, %v1298
        %v1302 = vsel %vm300, %v1298, %v1300
        %v1306 = vadd.f32 %v1284, %v1301
        %v1307 = vadd.f32 %v1285, %v1302
        %v1308 = vadd.f32 %v1286, %v1300
        %s1309 = sld [smem:[#allocation2 + $0x282]]
        %v1310 = vstv %s1309
        %v1311 = vmul.f32 %v277, %v1310
        %v1312 = vmul.f32 %v278, %v1310
        %v1313 = vmul.f32 %v279, %v1310
        %1317 = vrot.lane.b32.xlu0 %v1311, 126
        %v1318 = vpop.permute.xlu0 %1317
        %1319 = vrot.lane.b32.xlu0 %v1312, 126
        %v1320 = vpop.permute.xlu0 %1319
        %1321 = vrot.lane.b32.xlu0 %v1313, 126
        %v1322 = vpop.permute.xlu0 %1321
        %v1323 = vsel %vm323, %v1318, %v1320
        %v1324 = vsel %vm323, %v1320, %v1322
        %v1328 = vadd.f32 %v1306, %v1323
        %v1329 = vadd.f32 %v1307, %v1324
        %v1330 = vadd.f32 %v1308, %v1322
        %s1331 = sld [smem:[#allocation2 + $0x283]]
        %v1332 = vstv %s1331
        %v1333 = vmul.f32 %v277, %v1332
        %v1334 = vmul.f32 %v278, %v1332
        %v1335 = vmul.f32 %v279, %v1332
        %1339 = vrot.lane.b32.xlu0 %v1333, 110
        %v1340 = vpop.permute.xlu0 %1339
        %1341 = vrot.lane.b32.xlu0 %v1334, 110
        %v1342 = vpop.permute.xlu0 %1341
        %1343 = vrot.lane.b32.xlu0 %v1335, 110
        %v1344 = vpop.permute.xlu0 %1343
        %v1345 = vsel %vm346, %v1340, %v1342
        %v1346 = vsel %vm346, %v1342, %v1344
        %v1350 = vadd.f32 %v1328, %v1345
        %v1351 = vadd.f32 %v1329, %v1346
        %v1352 = vadd.f32 %v1330, %v1344
        %s1353 = sld [smem:[#allocation2 + $0x284]]
        %v1354 = vstv %s1353
        %v1355 = vmul.f32 %v277, %v1354
        %v1356 = vmul.f32 %v278, %v1354
        %v1357 = vmul.f32 %v279, %v1354
        %1361 = vrot.lane.b32.xlu0 %v1355, 109
        %v1362 = vpop.permute.xlu0 %1361
        %1363 = vrot.lane.b32.xlu0 %v1356, 109
        %v1364 = vpop.permute.xlu0 %1363
        %1365 = vrot.lane.b32.xlu0 %v1357, 109
        %v1366 = vpop.permute.xlu0 %1365
        %v1367 = vsel %vm369, %v1362, %v1364
        %v1368 = vsel %vm369, %v1364, %v1366
        %v1372 = vadd.f32 %v1350, %v1367
        %v1373 = vadd.f32 %v1351, %v1368
        %v1374 = vadd.f32 %v1352, %v1366
        %s1375 = sld [smem:[#allocation2 + $0x285]]
        %v1376 = vstv %s1375
        %v1377 = vmul.f32 %v277, %v1376
        %v1378 = vmul.f32 %v278, %v1376
        %v1379 = vmul.f32 %v279, %v1376
        %1383 = vrot.lane.b32.xlu0 %v1377, 108
        %v1384 = vpop.permute.xlu0 %1383
        %1385 = vrot.lane.b32.xlu0 %v1378, 108
        %v1386 = vpop.permute.xlu0 %1385
        %1387 = vrot.lane.b32.xlu0 %v1379, 108
        %v1388 = vpop.permute.xlu0 %1387
        %v1389 = vsel %vm392, %v1384, %v1386
        %v1390 = vsel %vm392, %v1386, %v1388
        %v1394 = vadd.f32 %v1372, %v1389
        %v1395 = vadd.f32 %v1373, %v1390
        %v1396 = vadd.f32 %v1374, %v1388
        %s1397 = sld [smem:[#allocation2 + $0x286]]
        %v1398 = vstv %s1397
        %v1399 = vmul.f32 %v277, %v1398
        %v1400 = vmul.f32 %v278, %v1398
        %v1401 = vmul.f32 %v279, %v1398
        %1405 = vrot.lane.b32.xlu0 %v1399, 92
        %v1406 = vpop.permute.xlu0 %1405
        %1407 = vrot.lane.b32.xlu0 %v1400, 92
        %v1408 = vpop.permute.xlu0 %1407
        %1409 = vrot.lane.b32.xlu0 %v1401, 92
        %v1410 = vpop.permute.xlu0 %1409
        %v1411 = vsel %vm415, %v1406, %v1408
        %v1412 = vsel %vm415, %v1408, %v1410
        %v1416 = vadd.f32 %v1394, %v1411
        %v1417 = vadd.f32 %v1395, %v1412
        %v1418 = vadd.f32 %v1396, %v1410
        %s1419 = sld [smem:[#allocation2 + $0x287]]
        %v1420 = vstv %s1419
        %v1421 = vmul.f32 %v277, %v1420
        %v1422 = vmul.f32 %v278, %v1420
        %v1423 = vmul.f32 %v279, %v1420
        %1427 = vrot.lane.b32.xlu0 %v1421, 91
        %v1428 = vpop.permute.xlu0 %1427
        %1429 = vrot.lane.b32.xlu0 %v1422, 91
        %v1430 = vpop.permute.xlu0 %1429
        %1431 = vrot.lane.b32.xlu0 %v1423, 91
        %v1432 = vpop.permute.xlu0 %1431
        %v1433 = vsel %vm438, %v1428, %v1430
        %v1434 = vsel %vm438, %v1430, %v1432
        %v1438 = vadd.f32 %v1416, %v1433
        %v1439 = vadd.f32 %v1417, %v1434
        %v1440 = vadd.f32 %v1418, %v1432
        %s1441 = sld [smem:[#allocation2 + $0x288]]
        %v1442 = vstv %s1441
        %v1443 = vmul.f32 %v277, %v1442
        %v1444 = vmul.f32 %v278, %v1442
        %v1445 = vmul.f32 %v279, %v1442
        %1449 = vrot.lane.b32.xlu0 %v1443, 90
        %v1450 = vpop.permute.xlu0 %1449
        %1451 = vrot.lane.b32.xlu0 %v1444, 90
        %v1452 = vpop.permute.xlu0 %1451
        %1453 = vrot.lane.b32.xlu0 %v1445, 90
        %v1454 = vpop.permute.xlu0 %1453
        %v1455 = vsel %vm461, %v1450, %v1452
        %v1456 = vsel %vm461, %v1452, %v1454
        %v1460 = vadd.f32 %v1438, %v1455
        %v1461 = vadd.f32 %v1439, %v1456
        %v1462 = vadd.f32 %v1440, %v1454
        %s1463 = sld [smem:[#allocation4 + $0x5]]
        %v1464 = vstv %s1463
        %v1465 = vadd.f32 %v1460, %v1464
        %v1466 = vadd.f32 %v1461, %v1464
        %v1467 = vadd.f32 %v1462, %v1464
        %v1468 = vmax.f32 %v1465, 0.0
        %v1469 = vmax.f32 %v1466, 0.0
        %v1470 = vmax.f32 %v1467, 0.0
        %v1471 = vmul.f32 %v1468, %v479
        %v1472 = vmul.f32 %v1469, %v480
        %v1473 = vmul.f32 %v1470, %v481
        %v1474 = vadd.f32 %v1471, %v1472
        %v1475 = vsel %vm489, %v1473, 0.0
        %v1476 = vadd.f32 %v1474, %v1475
        %1477 = vadd.xlane.f32.xlu0 %v1476
        %v1478 = vpop.xlane.xlu0 %1477
        %s1479 = sld [smem:[#allocation2 + $0x300]]
        %v1480 = vstv %s1479
        %v1481 = vmul.f32 %v277, %v1480
        %v1482 = vmul.f32 %v278, %v1480
        %v1483 = vmul.f32 %v279, %v1480
        %s1484 = sld [smem:[#allocation2 + $0x301]]
        %v1485 = vstv %s1484
        %v1486 = vmul.f32 %v277, %v1485
        %v1487 = vmul.f32 %v278, %v1485
        %v1488 = vmul.f32 %v279, %v1485
        %1492 = vrot.lane.b32.xlu0 %v1486, 127
        %v1493 = vpop.permute.xlu0 %1492
        %1494 = vrot.lane.b32.xlu0 %v1487, 127
        %v1495 = vpop.permute.xlu0 %1494
        %1496 = vrot.lane.b32.xlu0 %v1488, 127
        %v1497 = vpop.permute.xlu0 %1496
        %v1498 = vsel %vm300, %v1493, %v1495
        %v1499 = vsel %vm300, %v1495, %v1497
        %v1503 = vadd.f32 %v1481, %v1498
        %v1504 = vadd.f32 %v1482, %v1499
        %v1505 = vadd.f32 %v1483, %v1497
        %s1506 = sld [smem:[#allocation2 + $0x302]]
        %v1507 = vstv %s1506
        %v1508 = vmul.f32 %v277, %v1507
        %v1509 = vmul.f32 %v278, %v1507
        %v1510 = vmul.f32 %v279, %v1507
        %1514 = vrot.lane.b32.xlu0 %v1508, 126
        %v1515 = vpop.permute.xlu0 %1514
        %1516 = vrot.lane.b32.xlu0 %v1509, 126
        %v1517 = vpop.permute.xlu0 %1516
        %1518 = vrot.lane.b32.xlu0 %v1510, 126
        %v1519 = vpop.permute.xlu0 %1518
        %v1520 = vsel %vm323, %v1515, %v1517
        %v1521 = vsel %vm323, %v1517, %v1519
        %v1525 = vadd.f32 %v1503, %v1520
        %v1526 = vadd.f32 %v1504, %v1521
        %v1527 = vadd.f32 %v1505, %v1519
        %s1528 = sld [smem:[#allocation2 + $0x303]]
        %v1529 = vstv %s1528
        %v1530 = vmul.f32 %v277, %v1529
        %v1531 = vmul.f32 %v278, %v1529
        %v1532 = vmul.f32 %v279, %v1529
        %1536 = vrot.lane.b32.xlu0 %v1530, 110
        %v1537 = vpop.permute.xlu0 %1536
        %1538 = vrot.lane.b32.xlu0 %v1531, 110
        %v1539 = vpop.permute.xlu0 %1538
        %1540 = vrot.lane.b32.xlu0 %v1532, 110
        %v1541 = vpop.permute.xlu0 %1540
        %v1542 = vsel %vm346, %v1537, %v1539
        %v1543 = vsel %vm346, %v1539, %v1541
        %v1547 = vadd.f32 %v1525, %v1542
        %v1548 = vadd.f32 %v1526, %v1543
        %v1549 = vadd.f32 %v1527, %v1541
        %s1550 = sld [smem:[#allocation2 + $0x304]]
        %v1551 = vstv %s1550
        %v1552 = vmul.f32 %v277, %v1551
        %v1553 = vmul.f32 %v278, %v1551
        %v1554 = vmul.f32 %v279, %v1551
        %1558 = vrot.lane.b32.xlu0 %v1552, 109
        %v1559 = vpop.permute.xlu0 %1558
        %1560 = vrot.lane.b32.xlu0 %v1553, 109
        %v1561 = vpop.permute.xlu0 %1560
        %1562 = vrot.lane.b32.xlu0 %v1554, 109
        %v1563 = vpop.permute.xlu0 %1562
        %v1564 = vsel %vm369, %v1559, %v1561
        %v1565 = vsel %vm369, %v1561, %v1563
        %v1569 = vadd.f32 %v1547, %v1564
        %v1570 = vadd.f32 %v1548, %v1565
        %v1571 = vadd.f32 %v1549, %v1563
        %s1572 = sld [smem:[#allocation2 + $0x305]]
        %v1573 = vstv %s1572
        %v1574 = vmul.f32 %v277, %v1573
        %v1575 = vmul.f32 %v278, %v1573
        %v1576 = vmul.f32 %v279, %v1573
        %1580 = vrot.lane.b32.xlu0 %v1574, 108
        %v1581 = vpop.permute.xlu0 %1580
        %1582 = vrot.lane.b32.xlu0 %v1575, 108
        %v1583 = vpop.permute.xlu0 %1582
        %1584 = vrot.lane.b32.xlu0 %v1576, 108
        %v1585 = vpop.permute.xlu0 %1584
        %v1586 = vsel %vm392, %v1581, %v1583
        %v1587 = vsel %vm392, %v1583, %v1585
        %v1591 = vadd.f32 %v1569, %v1586
        %v1592 = vadd.f32 %v1570, %v1587
        %v1593 = vadd.f32 %v1571, %v1585
        %s1594 = sld [smem:[#allocation2 + $0x306]]
        %v1595 = vstv %s1594
        %v1596 = vmul.f32 %v277, %v1595
        %v1597 = vmul.f32 %v278, %v1595
        %v1598 = vmul.f32 %v279, %v1595
        %1602 = vrot.lane.b32.xlu0 %v1596, 92
        %v1603 = vpop.permute.xlu0 %1602
        %1604 = vrot.lane.b32.xlu0 %v1597, 92
        %v1605 = vpop.permute.xlu0 %1604
        %1606 = vrot.lane.b32.xlu0 %v1598, 92
        %v1607 = vpop.permute.xlu0 %1606
        %v1608 = vsel %vm415, %v1603, %v1605
        %v1609 = vsel %vm415, %v1605, %v1607
        %v1613 = vadd.f32 %v1591, %v1608
        %v1614 = vadd.f32 %v1592, %v1609
        %v1615 = vadd.f32 %v1593, %v1607
        %s1616 = sld [smem:[#allocation2 + $0x307]]
        %v1617 = vstv %s1616
        %v1618 = vmul.f32 %v277, %v1617
        %v1619 = vmul.f32 %v278, %v1617
        %v1620 = vmul.f32 %v279, %v1617
        %1624 = vrot.lane.b32.xlu0 %v1618, 91
        %v1625 = vpop.permute.xlu0 %1624
        %1626 = vrot.lane.b32.xlu0 %v1619, 91
        %v1627 = vpop.permute.xlu0 %1626
        %1628 = vrot.lane.b32.xlu0 %v1620, 91
        %v1629 = vpop.permute.xlu0 %1628
        %v1630 = vsel %vm438, %v1625, %v1627
        %v1631 = vsel %vm438, %v1627, %v1629
        %v1635 = vadd.f32 %v1613, %v1630
        %v1636 = vadd.f32 %v1614, %v1631
        %v1637 = vadd.f32 %v1615, %v1629
        %s1638 = sld [smem:[#allocation2 + $0x308]]
        %v1639 = vstv %s1638
        %v1640 = vmul.f32 %v277, %v1639
        %v1641 = vmul.f32 %v278, %v1639
        %v1642 = vmul.f32 %v279, %v1639
        %1646 = vrot.lane.b32.xlu0 %v1640, 90
        %v1647 = vpop.permute.xlu0 %1646
        %1648 = vrot.lane.b32.xlu0 %v1641, 90
        %v1649 = vpop.permute.xlu0 %1648
        %1650 = vrot.lane.b32.xlu0 %v1642, 90
        %v1651 = vpop.permute.xlu0 %1650
        %v1652 = vsel %vm461, %v1647, %v1649
        %v1653 = vsel %vm461, %v1649, %v1651
        %v1657 = vadd.f32 %v1635, %v1652
        %v1658 = vadd.f32 %v1636, %v1653
        %v1659 = vadd.f32 %v1637, %v1651
        %s1660 = sld [smem:[#allocation4 + $0x6]]
        %v1661 = vstv %s1660
        %v1662 = vadd.f32 %v1657, %v1661
        %v1663 = vadd.f32 %v1658, %v1661
        %v1664 = vadd.f32 %v1659, %v1661
        %v1665 = vmax.f32 %v1662, 0.0
        %v1666 = vmax.f32 %v1663, 0.0
        %v1667 = vmax.f32 %v1664, 0.0
        %v1668 = vmul.f32 %v1665, %v479
        %v1669 = vmul.f32 %v1666, %v480
        %v1670 = vmul.f32 %v1667, %v481
        %v1671 = vadd.f32 %v1668, %v1669
        %v1672 = vsel %vm489, %v1670, 0.0
        %v1673 = vadd.f32 %v1671, %v1672
        %1674 = vadd.xlane.f32.xlu0 %v1673
        %v1675 = vpop.xlane.xlu0 %1674
        %s1676 = sld [smem:[#allocation2 + $0x380]]
        %v1677 = vstv %s1676
        %v1678 = vmul.f32 %v277, %v1677
        %v1679 = vmul.f32 %v278, %v1677
        %v1680 = vmul.f32 %v279, %v1677
        %s1681 = sld [smem:[#allocation2 + $0x381]]
        %v1682 = vstv %s1681
        %v1683 = vmul.f32 %v277, %v1682
        %v1684 = vmul.f32 %v278, %v1682
        %v1685 = vmul.f32 %v279, %v1682
        %1689 = vrot.lane.b32.xlu0 %v1683, 127
        %v1690 = vpop.permute.xlu0 %1689
        %1691 = vrot.lane.b32.xlu0 %v1684, 127
        %v1692 = vpop.permute.xlu0 %1691
        %1693 = vrot.lane.b32.xlu0 %v1685, 127
        %v1694 = vpop.permute.xlu0 %1693
        %v1695 = vsel %vm300, %v1690, %v1692
        %v1696 = vsel %vm300, %v1692, %v1694
        %v1700 = vadd.f32 %v1678, %v1695
        %v1701 = vadd.f32 %v1679, %v1696
        %v1702 = vadd.f32 %v1680, %v1694
        %s1703 = sld [smem:[#allocation2 + $0x382]]
        %v1704 = vstv %s1703
        %v1705 = vmul.f32 %v277, %v1704
        %v1706 = vmul.f32 %v278, %v1704
        %v1707 = vmul.f32 %v279, %v1704
        %1711 = vrot.lane.b32.xlu0 %v1705, 126
        %v1712 = vpop.permute.xlu0 %1711
        %1713 = vrot.lane.b32.xlu0 %v1706, 126
        %v1714 = vpop.permute.xlu0 %1713
        %1715 = vrot.lane.b32.xlu0 %v1707, 126
        %v1716 = vpop.permute.xlu0 %1715
        %v1717 = vsel %vm323, %v1712, %v1714
        %v1718 = vsel %vm323, %v1714, %v1716
        %v1722 = vadd.f32 %v1700, %v1717
        %v1723 = vadd.f32 %v1701, %v1718
        %v1724 = vadd.f32 %v1702, %v1716
        %s1725 = sld [smem:[#allocation2 + $0x383]]
        %v1726 = vstv %s1725
        %v1727 = vmul.f32 %v277, %v1726
        %v1728 = vmul.f32 %v278, %v1726
        %v1729 = vmul.f32 %v279, %v1726
        %1733 = vrot.lane.b32.xlu0 %v1727, 110
        %v1734 = vpop.permute.xlu0 %1733
        %1735 = vrot.lane.b32.xlu0 %v1728, 110
        %v1736 = vpop.permute.xlu0 %1735
        %1737 = vrot.lane.b32.xlu0 %v1729, 110
        %v1738 = vpop.permute.xlu0 %1737
        %v1739 = vsel %vm346, %v1734, %v1736
        %v1740 = vsel %vm346, %v1736, %v1738
        %v1744 = vadd.f32 %v1722, %v1739
        %v1745 = vadd.f32 %v1723, %v1740
        %v1746 = vadd.f32 %v1724, %v1738
        %s1747 = sld [smem:[#allocation2 + $0x384]]
        %v1748 = vstv %s1747
        %v1749 = vmul.f32 %v277, %v1748
        %v1750 = vmul.f32 %v278, %v1748
        %v1751 = vmul.f32 %v279, %v1748
        %1755 = vrot.lane.b32.xlu0 %v1749, 109
        %v1756 = vpop.permute.xlu0 %1755
        %1757 = vrot.lane.b32.xlu0 %v1750, 109
        %v1758 = vpop.permute.xlu0 %1757
        %1759 = vrot.lane.b32.xlu0 %v1751, 109
        %v1760 = vpop.permute.xlu0 %1759
        %v1761 = vsel %vm369, %v1756, %v1758
        %v1762 = vsel %vm369, %v1758, %v1760
        %v1766 = vadd.f32 %v1744, %v1761
        %v1767 = vadd.f32 %v1745, %v1762
        %v1768 = vadd.f32 %v1746, %v1760
        %s1769 = sld [smem:[#allocation2 + $0x385]]
        %v1770 = vstv %s1769
        %v1771 = vmul.f32 %v277, %v1770
        %v1772 = vmul.f32 %v278, %v1770
        %v1773 = vmul.f32 %v279, %v1770
        %1777 = vrot.lane.b32.xlu0 %v1771, 108
        %v1778 = vpop.permute.xlu0 %1777
        %1779 = vrot.lane.b32.xlu0 %v1772, 108
        %v1780 = vpop.permute.xlu0 %1779
        %1781 = vrot.lane.b32.xlu0 %v1773, 108
        %v1782 = vpop.permute.xlu0 %1781
        %v1783 = vsel %vm392, %v1778, %v1780
        %v1784 = vsel %vm392, %v1780, %v1782
        %v1788 = vadd.f32 %v1766, %v1783
        %v1789 = vadd.f32 %v1767, %v1784
        %v1790 = vadd.f32 %v1768, %v1782
        %s1791 = sld [smem:[#allocation2 + $0x386]]
        %v1792 = vstv %s1791
        %v1793 = vmul.f32 %v277, %v1792
        %v1794 = vmul.f32 %v278, %v1792
        %v1795 = vmul.f32 %v279, %v1792
        %1799 = vrot.lane.b32.xlu0 %v1793, 92
        %v1800 = vpop.permute.xlu0 %1799
        %1801 = vrot.lane.b32.xlu0 %v1794, 92
        %v1802 = vpop.permute.xlu0 %1801
        %1803 = vrot.lane.b32.xlu0 %v1795, 92
        %v1804 = vpop.permute.xlu0 %1803
        %v1805 = vsel %vm415, %v1800, %v1802
        %v1806 = vsel %vm415, %v1802, %v1804
        %v1810 = vadd.f32 %v1788, %v1805
        %v1811 = vadd.f32 %v1789, %v1806
        %v1812 = vadd.f32 %v1790, %v1804
        %s1813 = sld [smem:[#allocation2 + $0x387]]
        %v1814 = vstv %s1813
        %v1815 = vmul.f32 %v277, %v1814
        %v1816 = vmul.f32 %v278, %v1814
        %v1817 = vmul.f32 %v279, %v1814
        %1821 = vrot.lane.b32.xlu0 %v1815, 91
        %v1822 = vpop.permute.xlu0 %1821
        %1823 = vrot.lane.b32.xlu0 %v1816, 91
        %v1824 = vpop.permute.xlu0 %1823
        %1825 = vrot.lane.b32.xlu0 %v1817, 91
        %v1826 = vpop.permute.xlu0 %1825
        %v1827 = vsel %vm438, %v1822, %v1824
        %v1828 = vsel %vm438, %v1824, %v1826
        %v1832 = vadd.f32 %v1810, %v1827
        %v1833 = vadd.f32 %v1811, %v1828
        %v1834 = vadd.f32 %v1812, %v1826
        %s1835 = sld [smem:[#allocation2 + $0x388]]
        %v1836 = vstv %s1835
        %v1837 = vmul.f32 %v277, %v1836
        %v1838 = vmul.f32 %v278, %v1836
        %v1839 = vmul.f32 %v279, %v1836
        %1843 = vrot.lane.b32.xlu0 %v1837, 90
        %v1844 = vpop.permute.xlu0 %1843
        %1845 = vrot.lane.b32.xlu0 %v1838, 90
        %v1846 = vpop.permute.xlu0 %1845
        %1847 = vrot.lane.b32.xlu0 %v1839, 90
        %v1848 = vpop.permute.xlu0 %1847
        %v1849 = vsel %vm461, %v1844, %v1846
        %v1850 = vsel %vm461, %v1846, %v1848
        %v1854 = vadd.f32 %v1832, %v1849
        %v1855 = vadd.f32 %v1833, %v1850
        %v1856 = vadd.f32 %v1834, %v1848
        %s1857 = sld [smem:[#allocation4 + $0x7]]
        %v1858 = vstv %s1857
        %v1859 = vadd.f32 %v1854, %v1858
        %v1860 = vadd.f32 %v1855, %v1858
        %v1861 = vadd.f32 %v1856, %v1858
        %v1862 = vmax.f32 %v1859, 0.0
        %v1863 = vmax.f32 %v1860, 0.0
        %v1864 = vmax.f32 %v1861, 0.0
        %v1865 = vmul.f32 %v1862, %v479
        %v1866 = vmul.f32 %v1863, %v480
        %v1867 = vmul.f32 %v1864, %v481
        %v1868 = vadd.f32 %v1865, %v1866
        %v1869 = vsel %vm489, %v1867, 0.0
        %v1870 = vadd.f32 %v1868, %v1869
        %1871 = vadd.xlane.f32.xlu0 %v1870
        %v1872 = vpop.xlane.xlu0 %1871
        %vm1873 = vcmask 7168
        %v1874 = vsel %vm1873, %v493, %v690
        %vm1875 = vcmask 15360
        %v1876 = vsel %vm1875, %v1874, %v887
        %vm1877 = vcmask 23552
        %v1878 = vsel %vm1877, %v1876, %v1084
        %vm1879 = vcmask 31744
        %v1880 = vsel %vm1879, %v1878, %v1281
        %vm1881 = vcmask 39936
        %v1882 = vsel %vm1881, %v1880, %v1478
        %vm1883 = vcmask 48128
        %v1884 = vsel %vm1883, %v1882, %v1675
        %vm1885 = vcmask 56320
        %v1886 = vsel %vm1885, %v1884, %v1872
        %v1887 = vld [vmem:[%s4] sm:$0xff]
        %v1888 = vld [vmem:[%s5] sm:$0x1]
        %v1890 = vperm.slane %v1888, 0
        %vm1892 = vcmask 64512
        %v1894 = vsel %vm1892, %v1886, 0
        %1896 = vmatpush.msra.mxu0 0.0
        %1897 = vmatpush.msra.mxu0 0.0
        %1898 = vmatpush.msra.mxu0 0.0
        %1899 = vmatpush.msra.mxu0 0.0
        %1900 = vmatpush.msra.mxu0 0.0
        %1901 = vmatpush.msra.mxu0 0.0
        %1902 = vmatpush.msra.mxu0 0.0
        %1903 = vmatpush.msra.mxu0 0.0
        %1904 = vmatpush.msra.mxu0 0.0
        %1905 = vmatpush.msra.mxu0 0.0
        %1906 = vmatpush.msra.mxu0 0.0
        %1907 = vmatpush.msra.mxu0 0.0
        %1908 = vmatpush.msra.mxu0 0.0
        %1909 = vmatpush.msra.mxu0 0.0
        %1910 = vmatpush.msra.mxu0 0.0
        %1911 = vmatpush.msra.mxu0 %v1887
        %1912 = vmatmul.f32.gmra.mxu0 %v1894
        %v1913 = vpop.f32.mrf.mxu0
        %v1914 = vadd.f32 %v1890, %v1913
        %1915 = vdwg.mxu0
        %vm1916 = vcmask 80896
        %1917 = vst.msk [vmem:[%s276] sm:$0xff] %vm1916, %v1914
        %p1918 = scmp.lt.s32.totalorder %s19, 1
        %s1919 = scalar_select %p1918, %s19, 1
        %s1920 = smul.addr %s1919, 8
        %s1921 = scalar_lea.vmem %s6, %s1920
        // Predicated region
        $region53: #{stack_tailored_forward.1} parent=43 // pred_check
          %p1922 = pneg %p168
        $region54: #{stack_tailored_forward.1} parent=43 // pred_check_branch
          %1924 = sbr.rel (%p1922) target = $region56
        $region55: #{stack_tailored_forward.1} parent=43 // pred_region
          _
        $region56: #{stack_tailored_forward.1} parent=43 // pred_fallthru
          _
      $region44: #{stack_tailored_forward.1} parent=5 // pred_fallthru
        _
      %p1925 = scmp.le.s32.totalorder 2, %s14
      // Predicated region
      $region57: #{stack_tailored_forward.1} parent=5 // pred_check
        %p1926 = pneg %p1925
      $region58: #{stack_tailored_forward.1} parent=5 // pred_check_branch
        %1928 = sbr.rel (%p1926) target = $region60
      $region59: #{stack_tailored_forward.1} parent=5 // pred_region
        %s1929 = ssub.s32 %s14, 2
        // Predicated region
        $region61: #{stack_tailored_forward.1} parent=59 // pred_check
          %p1930 = pneg %p174
        $region62: #{stack_tailored_forward.1} parent=59 // pred_check_branch
          %1932 = sbr.rel (%p1930) target = $region64
        $region63: #{stack_tailored_forward.1} parent=59 // pred_region
          %p1933 = scmp.lt.s32.totalorder %s20, 1
          %s1934 = scalar_select %p1933, %s20, 1
          %s1935 = smul.addr %s1934, 8
          %s1936 = scalar_lea.vmem %s6, %s1935
        $region64: #{stack_tailored_forward.1} parent=59 // pred_fallthru
          _
      $region60: #{stack_tailored_forward.1} parent=5 // pred_fallthru
        _
    $region6: #{stack_tailored_forward.1} parent=1 // loop_footer
      %s18 = sadd.s32 1, %s14
    $region7: #{stack_tailored_forward.1} parent=1 // loop_footer_branch
      %13 = sbr.rel target = $region3
    $region8: #{stack_tailored_forward.1} parent=1 // loop_exit
      _
    %1937 = vsyncpa [#allocation3], 1
    %s1938 = scalar_lea.sflag [#allocation3], 1
    %1939 = vsyncpa %s1938, 1
    %1940 = vsyncpa [#allocation5], 1

</llo_original>
